<compile_context>
chip_gen: v7x
topology: tpu7x:2x2x1
jax: 0.10.0
libtpu: 0.0.40
codegen_flags: <defaults>
</compile_context>

<pallas_src>
import numpy as np
import jax
import jax.numpy as jnp
from jax import lax
from jax.experimental import pallas as pl
from jax.experimental.pallas import tpu as pltpu


def _round_up(n, m):
    return ((n + m - 1) // m) * m


def _lane_batch_factor(batch):
    """Pack 2 batch elements on the lane axis (128-lane slabs) unless that
    would starve a multi-TensorCore chip (v7x) of parallel grid steps."""
    try:
        kind = jax.devices()[0].device_kind.lower()
        n_tc = 2 if "v7" in kind else 1
    except Exception:  # pragma: no cover - defensive
        n_tc = 1
    if batch % 2 == 0 and (batch // 2) >= n_tc:
        return 2
    return 1


def make_spectral_block(w_spec, conv_w, conv_b, alpha, *, channels, height,
                        width, modes, batch):
    """Builds (once, at parameter-setup time) all packed constants and returns
    a jitted forward(x) for x of shape (batch, channels, height, width)."""
    C, H, W, B = channels, height, width, batch
    Wf = W // 2 + 1
    WFP = _round_up(Wf, 8)              # padded half-spectrum width
    mh = min(modes, H)
    mw = min(modes // 2 + 1, Wf)
    LB = _lane_batch_factor(B)          # batch elems packed on the lane axis
    assert B % LB == 0
    G = B // LB                         # grid length
    CW = C * W
    LCW = LB * CW                       # lane width of the spatial slabs
    R1 = C * C * WFP                    # replicated half-spectrum width (1 lb)
    R = LB * R1                         # replicated half-spectrum width

    # ------------- host-side (numpy) constant packing, done ONCE ------------
    w_spec_np = np.asarray(w_spec, dtype=np.float64)
    conv_w_np = np.asarray(conv_w, dtype=np.float64)
    conv_b_np = np.asarray(conv_b, dtype=np.float64)
    alpha_np = np.asarray(alpha, dtype=np.float64)

    # Forward rDFT along W, replicated over output channels:
    #   g[h, (ri, lb, o, i, kw)] = (Re/Im of) sum_w x[lb,i,h,w] e^{-2*pi*i*kw*w/W}
    wn = np.arange(W, dtype=np.float64)[:, None]
    kw = np.arange(WFP, dtype=np.float64)[None, :]
    valid_w = (kw < Wf).astype(np.float64)
    ang_w = 2.0 * np.pi * wn * kw / W
    cw_f = np.cos(ang_w) * valid_w                     # (W, WFP)
    sw_fn = -np.sin(ang_w) * valid_w
    f1_re = np.kron(np.ones((1, C)), np.kron(np.eye(C), cw_f))   # (CW, R1)
    f1_im = np.kron(np.ones((1, C)), np.kron(np.eye(C), sw_fn))
    wf1 = np.concatenate([np.kron(np.eye(LB), f1_re),
                          np.kron(np.eye(LB), f1_im)], axis=1)   # (LCW, 2R)

    # Forward DFT along H:  Xr = ChT@Gr + ShT@Gi ,  Xi = ChT@Gi - ShT@Gr
    hh = np.arange(H, dtype=np.float64)
    ang_h = 2.0 * np.pi * np.outer(hh, hh) / H          # symmetric (H, H)
    chT = np.cos(ang_h)
    shT = np.sin(ang_h)
    sgn = np.concatenate([np.ones((1, R)), -np.ones((1, R))], axis=1)

    # Mode-masked spectral weight slabs (zero outside kept modes realizes the
    # truncate + zero-fill of the reference exactly):
    #   slab[kh, lb*R1 + o*C*WFP + i*WFP + kw] = W[i, o, kh, kw]
    wr4 = np.zeros((C, C, H, WFP))
    wi4 = np.zeros((C, C, H, WFP))
    wr4[:, :, :mh, :mw] = w_spec_np[:, :, :mh, :mw, 0]
    wi4[:, :, :mh, :mw] = w_spec_np[:, :, :mh, :mw, 1]
    wr_slab = np.tile(np.transpose(wr4, (2, 1, 0, 3)).reshape(H, R1), (1, LB))
    wi_slab = np.tile(np.transpose(wi4, (2, 1, 0, 3)).reshape(H, R1), (1, LB))

    # Inverse rDFT along kw, fused with the sum over input channels:
    #   [p_re | p_im] = [prod_re | prod_im] @ [[M1r, M1i], [-M1i, M1r]]
    ck = np.full((WFP, 1), 2.0)
    ck[0, 0] = 1.0
    if W % 2 == 0:
        ck[W // 2, 0] = 1.0
    kwc = np.arange(WFP, dtype=np.float64)[:, None]
    valid_c = (kwc < Wf).astype(np.float64)
    ang_i = 2.0 * np.pi * kwc * np.arange(W, dtype=np.float64)[None, :] / W
    fcr = valid_c * ck * np.cos(ang_i) / W              # (WFP, W)
    fci = valid_c * ck * np.sin(ang_i) / W
    m1r = np.kron(np.eye(LB), np.kron(np.eye(C), np.kron(np.ones((C, 1)), fcr)))
    m1i = np.kron(np.eye(LB), np.kron(np.eye(C), np.kron(np.ones((C, 1)), fci)))
    finv1 = np.block([[m1r, m1i], [-m1i, m1r]])         # (2R, 2*LCW)

    # Inverse DFT along kh:  x_spec = Er @ p_re - Ei @ p_im
    er = np.cos(ang_h) / H
    ei = np.sin(ang_h) / H

    # 1x1 conv with the residual folded in:  z = xs @ (I + kron) + spec + b
    mconv = np.kron(np.eye(LB), np.kron(conv_w_np.T + np.eye(C), np.eye(W)))
    bias_row = np.tile(np.repeat(conv_b_np, W), LB)[None, :]     # (1, LCW)
    alpha_row = np.tile(np.repeat(alpha_np, W), LB)[None, :]     # (1, LCW)

    f32 = jnp.float32
    consts = [jnp.asarray(a, dtype=f32) for a in
              (wf1, chT, shT, sgn, wr_slab, wi_slab, finv1, er, ei,
               mconv, bias_row, alpha_row)]

    # Advisory cost estimate so XLA schedules the surrounding ops sensibly.
    macs = (H * LCW * (2 * R)            # forward W-DFT
            + 2 * H * H * (2 * R)        # forward H-DFT (2 matmuls)
            + H * (2 * R) * (2 * LCW)    # inverse kw-DFT + channel reduction
            + 2 * H * H * LCW            # inverse kh-DFT
            + H * LCW * LCW)             # 1x1 conv (+ residual)
    bytes_accessed = int(sum(int(a.size) * 4 for a in consts)
                         + 2 * B * C * H * W * 4)
    cost = pl.CostEstimate(flops=int(2 * macs * G), transcendentals=0,
                           bytes_accessed=bytes_accessed)

    def kernel(xs_ref, wf1_ref, chT_ref, shT_ref, sgn_ref, wr_ref, wi_ref,
               finv_ref, er_ref, ei_ref, mconv_ref, b_ref, a_ref, o_ref):
        xs = xs_ref[...]                                          # (H, LCW)
        # (F1) forward rDFT along W (spectrum replicated across out-channels
        #      via the constant matrix -> no in-kernel relayout later).
        g = jnp.dot(xs, wf1_ref[...], preferred_element_type=f32)  # (H, 2R)
        # (F2) forward DFT along H: 2 wide matmuls + roll/sign-mask
        #      ([Gr|Gi] -> [Gi|-Gr]) instead of 4 narrow matmuls.
        gswap = pltpu.roll(g, shift=R, axis=1) * sgn_ref[...]
        xcat = (jnp.dot(chT_ref[...], g, preferred_element_type=f32)
                + jnp.dot(shT_ref[...], gswap, preferred_element_type=f32))
        # (M) per-mode complex channel mixing: pure VPU elementwise on
        #     lane-dense slabs (weights already zero outside kept modes).
        xr = xcat[:, :R]
        xi = xcat[:, R:]
        wr = wr_ref[...]
        wi = wi_ref[...]
        pcat = jnp.concatenate([xr * wr - xi * wi, xr * wi + xi * wr], axis=1)
        # (I1) inverse rDFT along kw + sum over input channels: ONE matmul.
        s1 = jnp.dot(pcat, finv_ref[...], preferred_element_type=f32)
        # (I2) inverse DFT along kh.
        spec = (jnp.dot(er_ref[...], s1[:, :LCW], preferred_element_type=f32)
                - jnp.dot(ei_ref[...], s1[:, LCW:], preferred_element_type=f32))
        # (C) residual + 1x1 conv (residual folded into mconv) + bias + PReLU.
        z = jnp.dot(xs, mconv_ref[...], preferred_element_type=f32) \
            + spec + b_ref[...]
        o_ref[...] = jnp.where(z >= 0.0, z, a_ref[...] * z)

    grid_spec = pltpu.PrefetchScalarGridSpec(
        num_scalar_prefetch=0,
        grid=(G,),
        in_specs=[
            pl.BlockSpec((None, H, LCW), lambda g: (g, 0, 0)),    # x slab
            pl.BlockSpec((LCW, 2 * R), lambda g: (0, 0)),         # fwd W-DFT
            pl.BlockSpec((H, H), lambda g: (0, 0)),               # fwd H cos
            pl.BlockSpec((H, H), lambda g: (0, 0)),               # fwd H sin
            pl.BlockSpec((1, 2 * R), lambda g: (0, 0)),           # roll sign
            pl.BlockSpec((H, R), lambda g: (0, 0)),               # Re(W_spec)
            pl.BlockSpec((H, R), lambda g: (0, 0)),               # Im(W_spec)
            pl.BlockSpec((2 * R, 2 * LCW), lambda g: (0, 0)),     # inv kw-DFT
            pl.BlockSpec((H, H), lambda g: (0, 0)),               # inv H cos
            pl.BlockSpec((H, H), lambda g: (0, 0)),               # inv H sin
            pl.BlockSpec((LCW, LCW), lambda g: (0, 0)),           # I + conv
            pl.BlockSpec((1, LCW), lambda g: (0, 0)),             # bias
            pl.BlockSpec((1, LCW), lambda g: (0, 0)),             # prelu a
        ],
        out_specs=pl.BlockSpec((None, H, LCW), lambda g: (g, 0, 0)),
    )

    call = pl.pallas_call(
        kernel,
        out_shape=jax.ShapeDtypeStruct((G, H, LCW), f32),
        grid_spec=grid_spec,
        compiler_params=pltpu.CompilerParams(
            dimension_semantics=("parallel",)),
        cost_estimate=cost,
    )

    def forward(x):
        assert x.shape == (B, C, H, W)
        # Layout plumbing only: (B,C,H,W) -> (G, H, LB*C*W) lane-dense slabs.
        xs = x.reshape(G, LB, C, H, W).transpose(0, 3, 1, 2, 4) \
              .reshape(G, H, LCW)
        out = call(xs, *consts)
        return out.reshape(G, H, LB, C, W).transpose(0, 2, 3, 1, 4) \
                  .reshape(B, C, H, W)

    return jax.jit(forward)


def spectral_block_reference(x, w_spec, conv_w, conv_b, alpha, *, modes):
    """Pure-JAX reference mirroring the PyTorch SpectralBlock forward."""
    B, C, H, W = x.shape
    Wf = W // 2 + 1
    mh = min(modes, H)
    mw = min(modes // 2 + 1, Wf)
    x_ft = jnp.fft.rfft2(x, axes=(-2, -1))
    wc = w_spec[..., 0] + 1j * w_spec[..., 1]
    prod = jnp.einsum('bixy,ioxy->boxy',
                      x_ft[:, :, :mh, :mw], wc[:, :, :mh, :mw],
                      precision=lax.Precision.HIGHEST)
    out_ft = jnp.zeros((B, C, H, Wf), dtype=x_ft.dtype).at[:, :, :mh, :mw].set(prod)
    x_spec = jnp.fft.irfft2(out_ft, s=(H, W), axes=(-2, -1))
    x_conv = jnp.einsum('oi,bihw->bohw', conv_w, x,
                        precision=lax.Precision.HIGHEST)
    x_conv = x_conv + conv_b[None, :, None, None]
    z = x + x_spec + x_conv
    return jnp.where(z >= 0.0, z, alpha[None, :, None, None] * z)


if __name__ == "__main__":
    B, C, H, W = 2, 4, 16, 16
    modes = 16

    key = jax.random.PRNGKey(0)
    kx, kws, kcw, kcb, ka = jax.random.split(key, 5)

    x = jax.random.normal(kx, (B, C, H, W), dtype=jnp.float32)
    # SpectralConv2d weight: (1/in_ch) * randn(in, out, modes, modes//2+1, 2)
    w_spec = (1.0 / C) * jax.random.normal(
        kws, (C, C, modes, modes // 2 + 1, 2), dtype=jnp.float32)
    # 1x1 Conv2d params (PyTorch-style uniform init, fan_in = C)
    bound = 1.0 / np.sqrt(C)
    conv_w = jax.random.uniform(kcw, (C, C), minval=-bound, maxval=bound,
                                dtype=jnp.float32)
    conv_b = jax.random.uniform(kcb, (C,), minval=-bound, maxval=bound,
                                dtype=jnp.float32)
    # Per-channel PReLU slopes
    alpha = jax.random.uniform(ka, (C,), minval=0.1, maxval=0.4,
                               dtype=jnp.float32)

    # Parameter-dependent packing happens once, here.
    fwd = make_spectral_block(w_spec, conv_w, conv_b, alpha,
                              channels=C, height=H, width=W,
                              modes=modes, batch=B)
    out = jax.block_until_ready(fwd(x))

    ref = jax.block_until_ready(
        spectral_block_reference(x, w_spec, conv_w, conv_b, alpha, modes=modes))

    assert out.shape == (B, C, H, W)
    max_err = float(np.max(np.abs(np.asarray(out) - np.asarray(ref))))
    # Tolerance sized for single-pass bf16 MXU matmuls (DEFAULT precision per
    # the perf review) checked against an f32 FFT reference.
    assert np.allclose(np.asarray(out), np.asarray(ref),
                       atol=5e-2, rtol=5e-2), f"max abs err = {max_err}"
    print("KERNEL_OK")
</pallas_src>

<mosaic_0001>
module attributes {stable_mosaic.version = 11 : i64} {
  func.func @kernel(%arg0: i32, %arg1: memref<1x16x128xf32, #tpu.memory_space<vmem>>, %arg2: memref<128x1024xf32, #tpu.memory_space<vmem>>, %arg3: memref<16x16xf32, #tpu.memory_space<vmem>>, %arg4: memref<16x16xf32, #tpu.memory_space<vmem>>, %arg5: memref<1x1024xf32, #tpu.memory_space<vmem>>, %arg6: memref<16x512xf32, #tpu.memory_space<vmem>>, %arg7: memref<16x512xf32, #tpu.memory_space<vmem>>, %arg8: memref<1024x256xf32, #tpu.memory_space<vmem>>, %arg9: memref<16x16xf32, #tpu.memory_space<vmem>>, %arg10: memref<16x16xf32, #tpu.memory_space<vmem>>, %arg11: memref<128x128xf32, #tpu.memory_space<vmem>>, %arg12: memref<1x128xf32, #tpu.memory_space<vmem>>, %arg13: memref<1x128xf32, #tpu.memory_space<vmem>>, %arg14: memref<1x16x128xf32, #tpu.memory_space<vmem>>) attributes {dimension_semantics = [#tpu.dimension_semantics<parallel>], iteration_bounds = array<i64: 1>, scalar_prefetch = 0 : i64, scratch_operands = 0 : i64, tpu.core_type = #tpu.core_type<tc>, window_params = [{transform_indices = @transform_0, window_bounds = array<i64: 1, 16, 128>}, {pipeline_mode = #tpu.pipeline_mode<synchronous>, transform_indices = @transform_1, window_bounds = array<i64: 128, 1024>}, {pipeline_mode = #tpu.pipeline_mode<synchronous>, transform_indices = @transform_2, window_bounds = array<i64: 16, 16>}, {pipeline_mode = #tpu.pipeline_mode<synchronous>, transform_indices = @transform_3, window_bounds = array<i64: 16, 16>}, {pipeline_mode = #tpu.pipeline_mode<synchronous>, transform_indices = @transform_4, window_bounds = array<i64: 1, 1024>}, {pipeline_mode = #tpu.pipeline_mode<synchronous>, transform_indices = @transform_5, window_bounds = array<i64: 16, 512>}, {pipeline_mode = #tpu.pipeline_mode<synchronous>, transform_indices = @transform_6, window_bounds = array<i64: 16, 512>}, {pipeline_mode = #tpu.pipeline_mode<synchronous>, transform_indices = @transform_7, window_bounds = array<i64: 1024, 256>}, {pipeline_mode = #tpu.pipeline_mode<synchronous>, transform_indices = @transform_8, window_bounds = array<i64: 16, 16>}, {pipeline_mode = #tpu.pipeline_mode<synchronous>, transform_indices = @transform_9, window_bounds = array<i64: 16, 16>}, {pipeline_mode = #tpu.pipeline_mode<synchronous>, transform_indices = @transform_10, window_bounds = array<i64: 128, 128>}, {pipeline_mode = #tpu.pipeline_mode<synchronous>, transform_indices = @transform_11, window_bounds = array<i64: 1, 128>}, {pipeline_mode = #tpu.pipeline_mode<synchronous>, transform_indices = @transform_12, window_bounds = array<i64: 1, 128>}, {transform_indices = @transform_13, window_bounds = array<i64: 1, 16, 128>}]} {
    %c0 = arith.constant 0 : index
    %c0_0 = arith.constant 0 : index
    %c0_1 = arith.constant 0 : index
    %0 = vector.load %arg1[%c0, %c0_0, %c0_1] : memref<1x16x128xf32, #tpu.memory_space<vmem>>, vector<1x16x128xf32>
    %1 = vector.shape_cast %0 : vector<1x16x128xf32> to vector<16x128xf32>
    %c0_2 = arith.constant 0 : index
    %c0_3 = arith.constant 0 : index
    %2 = vector.load %arg2[%c0_2, %c0_3] : memref<128x1024xf32, #tpu.memory_space<vmem>>, vector<128x1024xf32>
    %cst = arith.constant dense<0.000000e+00> : vector<16x1024xf32>
    %3 = tpu.matmul %1, %2, %cst {dimension_numbers = #tpu.dot_dimension_numbers<[1], [0], [0], [1], [0, 0, 1, 1], [], []>} : vector<16x128xf32>, vector<128x1024xf32>, vector<16x1024xf32> -> vector<16x1024xf32>
    %c512_i32 = arith.constant 512 : i32
    %4 = tpu.dynamic_rotate %3 by %c512_i32 dim 1 : vector<16x1024xf32>, i32 -> vector<16x1024xf32>
    %c0_4 = arith.constant 0 : index
    %c0_5 = arith.constant 0 : index
    %5 = vector.load %arg5[%c0_4, %c0_5] : memref<1x1024xf32, #tpu.memory_space<vmem>>, vector<1x1024xf32>
    %6 = vector.broadcast %5 : vector<1x1024xf32> to vector<16x1024xf32>
    %7 = arith.mulf %4, %6 : vector<16x1024xf32>
    %c0_6 = arith.constant 0 : index
    %c0_7 = arith.constant 0 : index
    %8 = vector.load %arg3[%c0_6, %c0_7] : memref<16x16xf32, #tpu.memory_space<vmem>>, vector<16x16xf32>
    %cst_8 = arith.constant dense<0.000000e+00> : vector<16x1024xf32>
    %9 = tpu.matmul %8, %3, %cst_8 {dimension_numbers = #tpu.dot_dimension_numbers<[1], [0], [0], [1], [0, 0, 1, 1], [], []>} : vector<16x16xf32>, vector<16x1024xf32>, vector<16x1024xf32> -> vector<16x1024xf32>
    %c0_9 = arith.constant 0 : index
    %c0_10 = arith.constant 0 : index
    %10 = vector.load %arg4[%c0_9, %c0_10] : memref<16x16xf32, #tpu.memory_space<vmem>>, vector<16x16xf32>
    %cst_11 = arith.constant dense<0.000000e+00> : vector<16x1024xf32>
    %11 = tpu.matmul %10, %7, %cst_11 {dimension_numbers = #tpu.dot_dimension_numbers<[1], [0], [0], [1], [0, 0, 1, 1], [], []>} : vector<16x16xf32>, vector<16x1024xf32>, vector<16x1024xf32> -> vector<16x1024xf32>
    %12 = arith.addf %9, %11 : vector<16x1024xf32>
    %13 = vector.extract_strided_slice %12 {offsets = [0, 0], sizes = [16, 512], strides = [1, 1]} : vector<16x1024xf32> to vector<16x512xf32>
    %14 = vector.extract_strided_slice %12 {offsets = [0, 512], sizes = [16, 512], strides = [1, 1]} : vector<16x1024xf32> to vector<16x512xf32>
    %c0_12 = arith.constant 0 : index
    %c0_13 = arith.constant 0 : index
    %15 = vector.load %arg6[%c0_12, %c0_13] : memref<16x512xf32, #tpu.memory_space<vmem>>, vector<16x512xf32>
    %c0_14 = arith.constant 0 : index
    %c0_15 = arith.constant 0 : index
    %16 = vector.load %arg7[%c0_14, %c0_15] : memref<16x512xf32, #tpu.memory_space<vmem>>, vector<16x512xf32>
    %17 = arith.mulf %13, %15 : vector<16x512xf32>
    %18 = arith.mulf %14, %16 : vector<16x512xf32>
    %19 = arith.subf %17, %18 : vector<16x512xf32>
    %20 = arith.mulf %13, %16 : vector<16x512xf32>
    %21 = arith.mulf %14, %15 : vector<16x512xf32>
    %22 = arith.addf %20, %21 : vector<16x512xf32>
    %23 = tpu.concatenate %19, %22 in 1 : vector<16x512xf32>, vector<16x512xf32> -> vector<16x1024xf32>
    %c0_16 = arith.constant 0 : index
    %c0_17 = arith.constant 0 : index
    %24 = vector.load %arg8[%c0_16, %c0_17] : memref<1024x256xf32, #tpu.memory_space<vmem>>, vector<1024x256xf32>
    %cst_18 = arith.constant dense<0.000000e+00> : vector<16x256xf32>
    %25 = tpu.matmul %23, %24, %cst_18 {dimension_numbers = #tpu.dot_dimension_numbers<[1], [0], [0], [1], [0, 0, 1, 1], [], []>} : vector<16x1024xf32>, vector<1024x256xf32>, vector<16x256xf32> -> vector<16x256xf32>
    %c0_19 = arith.constant 0 : index
    %c0_20 = arith.constant 0 : index
    %26 = vector.load %arg9[%c0_19, %c0_20] : memref<16x16xf32, #tpu.memory_space<vmem>>, vector<16x16xf32>
    %27 = vector.extract_strided_slice %25 {offsets = [0, 0], sizes = [16, 128], strides = [1, 1]} : vector<16x256xf32> to vector<16x128xf32>
    %cst_21 = arith.constant dense<0.000000e+00> : vector<16x128xf32>
    %28 = tpu.matmul %26, %27, %cst_21 {dimension_numbers = #tpu.dot_dimension_numbers<[1], [0], [0], [1], [0, 0, 1, 1], [], []>} : vector<16x16xf32>, vector<16x128xf32>, vector<16x128xf32> -> vector<16x128xf32>
    %c0_22 = arith.constant 0 : index
    %c0_23 = arith.constant 0 : index
    %29 = vector.load %arg10[%c0_22, %c0_23] : memref<16x16xf32, #tpu.memory_space<vmem>>, vector<16x16xf32>
    %30 = vector.extract_strided_slice %25 {offsets = [0, 128], sizes = [16, 128], strides = [1, 1]} : vector<16x256xf32> to vector<16x128xf32>
    %cst_24 = arith.constant dense<0.000000e+00> : vector<16x128xf32>
    %31 = tpu.matmul %29, %30, %cst_24 {dimension_numbers = #tpu.dot_dimension_numbers<[1], [0], [0], [1], [0, 0, 1, 1], [], []>} : vector<16x16xf32>, vector<16x128xf32>, vector<16x128xf32> -> vector<16x128xf32>
    %32 = arith.subf %28, %31 : vector<16x128xf32>
    %c0_25 = arith.constant 0 : index
    %c0_26 = arith.constant 0 : index
    %33 = vector.load %arg11[%c0_25, %c0_26] : memref<128x128xf32, #tpu.memory_space<vmem>>, vector<128x128xf32>
    %cst_27 = arith.constant dense<0.000000e+00> : vector<16x128xf32>
    %34 = tpu.matmul %1, %33, %cst_27 {dimension_numbers = #tpu.dot_dimension_numbers<[1], [0], [0], [1], [0, 0, 1, 1], [], []>} : vector<16x128xf32>, vector<128x128xf32>, vector<16x128xf32> -> vector<16x128xf32>
    %35 = arith.addf %34, %32 : vector<16x128xf32>
    %c0_28 = arith.constant 0 : index
    %c0_29 = arith.constant 0 : index
    %36 = vector.load %arg12[%c0_28, %c0_29] : memref<1x128xf32, #tpu.memory_space<vmem>>, vector<1x128xf32>
    %37 = vector.broadcast %36 : vector<1x128xf32> to vector<16x128xf32>
    %38 = arith.addf %35, %37 : vector<16x128xf32>
    %cst_30 = arith.constant 0.000000e+00 : f32
    %39 = vector.broadcast %cst_30 : f32 to vector<16x128xf32>
    %40 = arith.cmpf oge, %38, %39 : vector<16x128xf32>
    %c0_31 = arith.constant 0 : index
    %c0_32 = arith.constant 0 : index
    %41 = vector.load %arg13[%c0_31, %c0_32] : memref<1x128xf32, #tpu.memory_space<vmem>>, vector<1x128xf32>
    %42 = vector.broadcast %41 : vector<1x128xf32> to vector<16x128xf32>
    %43 = arith.mulf %42, %38 : vector<16x128xf32>
    %44 = arith.select %40, %38, %43 : vector<16x128xi1>, vector<16x128xf32>
    %c0_33 = arith.constant 0 : index
    %c0_34 = arith.constant 0 : index
    %c0_35 = arith.constant 0 : index
    %45 = vector.load %arg14[%c0_33, %c0_34, %c0_35] : memref<1x16x128xf32, #tpu.memory_space<vmem>>, vector<1x16x128xf32>
    %46 = vector.shape_cast %45 : vector<1x16x128xf32> to vector<16x128xf32>
    %47 = vector.shape_cast %44 : vector<16x128xf32> to vector<1x16x128xf32>
    tpu.vector_store %arg14[%c0_33, %c0_34, %c0_35], %47 {strides = array<i32>} : memref<1x16x128xf32, #tpu.memory_space<vmem>>, vector<1x16x128xf32>,
    return
  }
  func.func @transform_0(%arg0: i32) -> (i32, i32, i32) {
    %c0_i32 = arith.constant 0 : i32
    %c0_i32_0 = arith.constant 0 : i32
    %c0_i32_1 = arith.constant 0 : i32
    return %arg0, %c0_i32, %c0_i32_0 : i32, i32, i32
  }
  func.func @transform_1(%arg0: i32) -> (i32, i32) {
    %c0_i32 = arith.constant 0 : i32
    %c0_i32_0 = arith.constant 0 : i32
    %c0_i32_1 = arith.constant 0 : i32
    return %c0_i32, %c0_i32_0 : i32, i32
  }
  func.func @transform_2(%arg0: i32) -> (i32, i32) {
    %c0_i32 = arith.constant 0 : i32
    %c0_i32_0 = arith.constant 0 : i32
    %c0_i32_1 = arith.constant 0 : i32
    return %c0_i32, %c0_i32_0 : i32, i32
  }
  func.func @transform_3(%arg0: i32) -> (i32, i32) {
    %c0_i32 = arith.constant 0 : i32
    %c0_i32_0 = arith.constant 0 : i32
    %c0_i32_1 = arith.constant 0 : i32
    return %c0_i32, %c0_i32_0 : i32, i32
  }
  func.func @transform_4(%arg0: i32) -> (i32, i32) {
    %c0_i32 = arith.constant 0 : i32
    %c0_i32_0 = arith.constant 0 : i32
    %c0_i32_1 = arith.constant 0 : i32
    return %c0_i32, %c0_i32_0 : i32, i32
  }
  func.func @transform_5(%arg0: i32) -> (i32, i32) {
    %c0_i32 = arith.constant 0 : i32
    %c0_i32_0 = arith.constant 0 : i32
    %c0_i32_1 = arith.constant 0 : i32
    return %c0_i32, %c0_i32_0 : i32, i32
  }
  func.func @transform_6(%arg0: i32) -> (i32, i32) {
    %c0_i32 = arith.constant 0 : i32
    %c0_i32_0 = arith.constant 0 : i32
    %c0_i32_1 = arith.constant 0 : i32
    return %c0_i32, %c0_i32_0 : i32, i32
  }
  func.func @transform_7(%arg0: i32) -> (i32, i32) {
    %c0_i32 = arith.constant 0 : i32
    %c0_i32_0 = arith.constant 0 : i32
    %c0_i32_1 = arith.constant 0 : i32
    return %c0_i32, %c0_i32_0 : i32, i32
  }
  func.func @transform_8(%arg0: i32) -> (i32, i32) {
    %c0_i32 = arith.constant 0 : i32
    %c0_i32_0 = arith.constant 0 : i32
    %c0_i32_1 = arith.constant 0 : i32
    return %c0_i32, %c0_i32_0 : i32, i32
  }
  func.func @transform_9(%arg0: i32) -> (i32, i32) {
    %c0_i32 = arith.constant 0 : i32
    %c0_i32_0 = arith.constant 0 : i32
    %c0_i32_1 = arith.constant 0 : i32
    return %c0_i32, %c0_i32_0 : i32, i32
  }
  func.func @transform_10(%arg0: i32) -> (i32, i32) {
    %c0_i32 = arith.constant 0 : i32
    %c0_i32_0 = arith.constant 0 : i32
    %c0_i32_1 = arith.constant 0 : i32
    return %c0_i32, %c0_i32_0 : i32, i32
  }
  func.func @transform_11(%arg0: i32) -> (i32, i32) {
    %c0_i32 = arith.constant 0 : i32
    %c0_i32_0 = arith.constant 0 : i32
    %c0_i32_1 = arith.constant 0 : i32
    return %c0_i32, %c0_i32_0 : i32, i32
  }
  func.func @transform_12(%arg0: i32) -> (i32, i32) {
    %c0_i32 = arith.constant 0 : i32
    %c0_i32_0 = arith.constant 0 : i32
    %c0_i32_1 = arith.constant 0 : i32
    return %c0_i32, %c0_i32_0 : i32, i32
  }
  func.func @transform_13(%arg0: i32) -> (i32, i32, i32) {
    %c0_i32 = arith.constant 0 : i32
    %c0_i32_0 = arith.constant 0 : i32
    %c0_i32_1 = arith.constant 0 : i32
    return %arg0, %c0_i32, %c0_i32_0 : i32, i32, i32
  }
}

</mosaic_0001>

<llo_original>
// kernel: forward.1
$region0: #{forward.1}
  #allocation0 [shape = 'u32[]', space=smem, size = 0x4, offset = 0x4, fixed_abs, tag = 'smem constant byte address 0x4 - core index']
  #allocation1 [shape = 'u32[144,128]{1,0:T(1,128)}', space=vmem, size = 0x12000, scoped, tag = 'internal scratch']
  %s0 = inlined_call_operand.vmem [shape: f32[1,16,128], index: 0, kind: input, shape index: {}]
  %s1 = inlined_call_operand.hbm [shape: f32[128,1024], index: 1, kind: input, shape index: {}]
  %s2 = inlined_call_operand.vmem [shape: f32[16,16], index: 2, kind: input, shape index: {}]
  %s3 = inlined_call_operand.vmem [shape: f32[16,16], index: 3, kind: input, shape index: {}]
  %s4 = inlined_call_operand.vmem [shape: f32[1,1024], index: 4, kind: input, shape index: {}]
  %s5 = inlined_call_operand.vmem [shape: f32[16,512], index: 5, kind: input, shape index: {}]
  %s6 = inlined_call_operand.vmem [shape: f32[16,512], index: 6, kind: input, shape index: {}]
  %s7 = inlined_call_operand.hbm [shape: f32[1024,256], index: 7, kind: input, shape index: {}]
  %s8 = inlined_call_operand.vmem [shape: f32[16,16], index: 8, kind: input, shape index: {}]
  %s9 = inlined_call_operand.vmem [shape: f32[16,16], index: 9, kind: input, shape index: {}]
  %s10 = inlined_call_operand.vmem [shape: f32[128,128], index: 10, kind: input, shape index: {}]
  %s11 = inlined_call_operand.vmem [shape: f32[1,128], index: 11, kind: input, shape index: {}]
  %s12 = inlined_call_operand.vmem [shape: f32[1,128], index: 12, kind: input, shape index: {}]
  %s13 = inlined_call_operand.vmem [shape: f32[1,16,128], index: 13, kind: output, shape index: {}]
  %s14 = sld [smem:[#allocation0]]
  $region70: #{forward.1} parent=0
    _
  %s16 = ssub.s32 1, %s14
  %s17 = scalar_select 0, %s16, %s14
  $region1: #{forward.1} parent=0
    #allocation2 [shape = 'u8[524288]{0}', space=vmem, size = 0x80000, scoped, tag = 'input window, operand 1, single buffered']
    #allocation3 [shape = 's32[1]{0}', space=sflag, size = 0x4, scoped, tag = 'scoped memory for forward.1']
    #allocation4 [shape = 'u8[1048576]{0}', space=vmem, size = 0x100000, scoped, tag = 'input window, operand 7, single buffered']
    #allocation5 [shape = 's32[1]{0}', space=sflag, size = 0x4, scoped, tag = 'scoped memory for forward.1']
    %18 = vsyncpa [#allocation3], 0
    %19 = vsyncpa [#allocation5], 0
    // Predicated region
    $region2: #{forward.1} parent=1 // pred_check
      _
    $region3: #{forward.1} parent=1 // pred_check_branch
      %21 = sbr.rel (0) target = $region5
    $region4: #{forward.1} parent=1 // pred_region
      _
    $region5: #{forward.1} parent=1 // pred_fallthru
      _
    // Predicated region
    $region6: #{forward.1} parent=1 // pred_check
      _
    $region7: #{forward.1} parent=1 // pred_check_branch
      %23 = sbr.rel (0) target = $region9
    $region8: #{forward.1} parent=1 // pred_region
      %s25 = ssub.s32 16384, 16384
      %26 = vsyncadd [#allocation3], %s25
      %s27 = sshll.u32 [#allocation2], 4
      %s28 = int_to_ptr.vmem [resolvable:$true] %s27
      %33 = dma.hbm_to_vmem [thread:$0]  %s1, 16384, %s28, [#allocation3], 1024, 1024, 64
    $region9: #{forward.1} parent=1 // pred_fallthru
      _
    // Predicated region
    $region10: #{forward.1} parent=1 // pred_check
      _
    $region11: #{forward.1} parent=1 // pred_check_branch
      %35 = sbr.rel (0) target = $region13
    $region12: #{forward.1} parent=1 // pred_region
      _
    $region13: #{forward.1} parent=1 // pred_fallthru
      _
    // Predicated region
    $region14: #{forward.1} parent=1 // pred_check
      _
    $region15: #{forward.1} parent=1 // pred_check_branch
      %37 = sbr.rel (0) target = $region17
    $region16: #{forward.1} parent=1 // pred_region
      _
    $region17: #{forward.1} parent=1 // pred_fallthru
      _
    // Predicated region
    $region18: #{forward.1} parent=1 // pred_check
      _
    $region19: #{forward.1} parent=1 // pred_check_branch
      %39 = sbr.rel (0) target = $region21
    $region20: #{forward.1} parent=1 // pred_region
      _
    $region21: #{forward.1} parent=1 // pred_fallthru
      _
    // Predicated region
    $region22: #{forward.1} parent=1 // pred_check
      _
    $region23: #{forward.1} parent=1 // pred_check_branch
      %41 = sbr.rel (0) target = $region25
    $region24: #{forward.1} parent=1 // pred_region
      _
    $region25: #{forward.1} parent=1 // pred_fallthru
      _
    // Predicated region
    $region26: #{forward.1} parent=1 // pred_check
      _
    $region27: #{forward.1} parent=1 // pred_check_branch
      %43 = sbr.rel (0) target = $region29
    $region28: #{forward.1} parent=1 // pred_region
      _
    $region29: #{forward.1} parent=1 // pred_fallthru
      _
    // Predicated region
    $region30: #{forward.1} parent=1 // pred_check
      _
    $region31: #{forward.1} parent=1 // pred_check_branch
      %45 = sbr.rel (0) target = $region33
    $region32: #{forward.1} parent=1 // pred_region
      %s47 = ssub.s32 32768, 32768
      %48 = vsyncadd [#allocation5], %s47
      %s49 = sshll.u32 [#allocation4], 4
      %s50 = int_to_ptr.vmem [resolvable:$true] %s49
      %55 = dma.hbm_to_vmem [thread:$0]  %s7, 32768, %s50, [#allocation5], 256, 256, 16
    $region33: #{forward.1} parent=1 // pred_fallthru
      _
    // Predicated region
    $region34: #{forward.1} parent=1 // pred_check
      _
    $region35: #{forward.1} parent=1 // pred_check_branch
      %57 = sbr.rel (0) target = $region37
    $region36: #{forward.1} parent=1 // pred_region
      _
    $region37: #{forward.1} parent=1 // pred_fallthru
      _
    // Predicated region
    $region38: #{forward.1} parent=1 // pred_check
      _
    $region39: #{forward.1} parent=1 // pred_check_branch
      %59 = sbr.rel (0) target = $region41
    $region40: #{forward.1} parent=1 // pred_region
      _
    $region41: #{forward.1} parent=1 // pred_fallthru
      _
    // Predicated region
    $region42: #{forward.1} parent=1 // pred_check
      _
    $region43: #{forward.1} parent=1 // pred_check_branch
      %61 = sbr.rel (0) target = $region45
    $region44: #{forward.1} parent=1 // pred_region
      _
    $region45: #{forward.1} parent=1 // pred_fallthru
      _
    // Predicated region
    $region46: #{forward.1} parent=1 // pred_check
      _
    $region47: #{forward.1} parent=1 // pred_check_branch
      %63 = sbr.rel (0) target = $region49
    $region48: #{forward.1} parent=1 // pred_region
      _
    $region49: #{forward.1} parent=1 // pred_fallthru
      _
    // Predicated region
    $region50: #{forward.1} parent=1 // pred_check
      _
    $region51: #{forward.1} parent=1 // pred_check_branch
      %65 = sbr.rel (0) target = $region53
    $region52: #{forward.1} parent=1 // pred_region
      _
    $region53: #{forward.1} parent=1 // pred_fallthru
      _
    // Predicated region
    $region54: #{forward.1} parent=1 // pred_check
      _
    $region55: #{forward.1} parent=1 // pred_check_branch
      %67 = sbr.rel (0) target = $region57
    $region56: #{forward.1} parent=1 // pred_region
      %68 = dma.done [#allocation3], 16384
    $region57: #{forward.1} parent=1 // pred_fallthru
      _
    // Predicated region
    $region58: #{forward.1} parent=1 // pred_check
      _
    $region59: #{forward.1} parent=1 // pred_check_branch
      %70 = sbr.rel (0) target = $region61
    $region60: #{forward.1} parent=1 // pred_region
      %71 = dma.done [#allocation5], 32768
    $region61: #{forward.1} parent=1 // pred_fallthru
      _
    %v72 = vld [vmem:[%s0] sm:$0xff]
    %v73 = vld [vmem:[%s0 + $0x8] sm:$0xff]
    %v74 = vld [vmem:[#allocation2] sm:$0xff]
    %v75 = vld [vmem:[#allocation2 + $0x8] sm:$0xff]
    %v76 = vld [vmem:[#allocation2 + $0x10] sm:$0xff]
    %v77 = vld [vmem:[#allocation2 + $0x18] sm:$0xff]
    %v78 = vld [vmem:[#allocation2 + $0x20] sm:$0xff]
    %v79 = vld [vmem:[#allocation2 + $0x28] sm:$0xff]
    %v80 = vld [vmem:[#allocation2 + $0x30] sm:$0xff]
    %v81 = vld [vmem:[#allocation2 + $0x38] sm:$0xff]
    %v82 = vld [vmem:[#allocation2 + $0x40] sm:$0xff]
    %v83 = vld [vmem:[#allocation2 + $0x48] sm:$0xff]
    %v84 = vld [vmem:[#allocation2 + $0x50] sm:$0xff]
    %v85 = vld [vmem:[#allocation2 + $0x58] sm:$0xff]
    %v86 = vld [vmem:[#allocation2 + $0x60] sm:$0xff]
    %v87 = vld [vmem:[#allocation2 + $0x68] sm:$0xff]
    %v88 = vld [vmem:[#allocation2 + $0x70] sm:$0xff]
    %v89 = vld [vmem:[#allocation2 + $0x78] sm:$0xff]
    %v90 = vld [vmem:[#allocation2 + $0x80] sm:$0xff]
    %v91 = vld [vmem:[#allocation2 + $0x88] sm:$0xff]
    %v92 = vld [vmem:[#allocation2 + $0x90] sm:$0xff]
    %v93 = vld [vmem:[#allocation2 + $0x98] sm:$0xff]
    %v94 = vld [vmem:[#allocation2 + $0xa0] sm:$0xff]
    %v95 = vld [vmem:[#allocation2 + $0xa8] sm:$0xff]
    %v96 = vld [vmem:[#allocation2 + $0xb0] sm:$0xff]
    %v97 = vld [vmem:[#allocation2 + $0xb8] sm:$0xff]
    %v98 = vld [vmem:[#allocation2 + $0xc0] sm:$0xff]
    %v99 = vld [vmem:[#allocation2 + $0xc8] sm:$0xff]
    %v100 = vld [vmem:[#allocation2 + $0xd0] sm:$0xff]
    %v101 = vld [vmem:[#allocation2 + $0xd8] sm:$0xff]
    %v102 = vld [vmem:[#allocation2 + $0xe0] sm:$0xff]
    %v103 = vld [vmem:[#allocation2 + $0xe8] sm:$0xff]
    %v104 = vld [vmem:[#allocation2 + $0xf0] sm:$0xff]
    %v105 = vld [vmem:[#allocation2 + $0xf8] sm:$0xff]
    %v106 = vld [vmem:[#allocation2 + $0x100] sm:$0xff]
    %v107 = vld [vmem:[#allocation2 + $0x108] sm:$0xff]
    %v108 = vld [vmem:[#allocation2 + $0x110] sm:$0xff]
    %v109 = vld [vmem:[#allocation2 + $0x118] sm:$0xff]
    %v110 = vld [vmem:[#allocation2 + $0x120] sm:$0xff]
    %v111 = vld [vmem:[#allocation2 + $0x128] sm:$0xff]
    %v112 = vld [vmem:[#allocation2 + $0x130] sm:$0xff]
    %v113 = vld [vmem:[#allocation2 + $0x138] sm:$0xff]
    %v114 = vld [vmem:[#allocation2 + $0x140] sm:$0xff]
    %v115 = vld [vmem:[#allocation2 + $0x148] sm:$0xff]
    %v116 = vld [vmem:[#allocation2 + $0x150] sm:$0xff]
    %v117 = vld [vmem:[#allocation2 + $0x158] sm:$0xff]
    %v118 = vld [vmem:[#allocation2 + $0x160] sm:$0xff]
    %v119 = vld [vmem:[#allocation2 + $0x168] sm:$0xff]
    %v120 = vld [vmem:[#allocation2 + $0x170] sm:$0xff]
    %v121 = vld [vmem:[#allocation2 + $0x178] sm:$0xff]
    %v122 = vld [vmem:[#allocation2 + $0x180] sm:$0xff]
    %v123 = vld [vmem:[#allocation2 + $0x188] sm:$0xff]
    %v124 = vld [vmem:[#allocation2 + $0x190] sm:$0xff]
    %v125 = vld [vmem:[#allocation2 + $0x198] sm:$0xff]
    %v126 = vld [vmem:[#allocation2 + $0x1a0] sm:$0xff]
    %v127 = vld [vmem:[#allocation2 + $0x1a8] sm:$0xff]
    %v128 = vld [vmem:[#allocation2 + $0x1b0] sm:$0xff]
    %v129 = vld [vmem:[#allocation2 + $0x1b8] sm:$0xff]
    %v130 = vld [vmem:[#allocation2 + $0x1c0] sm:$0xff]
    %v131 = vld [vmem:[#allocation2 + $0x1c8] sm:$0xff]
    %v132 = vld [vmem:[#allocation2 + $0x1d0] sm:$0xff]
    %v133 = vld [vmem:[#allocation2 + $0x1d8] sm:$0xff]
    %v134 = vld [vmem:[#allocation2 + $0x1e0] sm:$0xff]
    %v135 = vld [vmem:[#allocation2 + $0x1e8] sm:$0xff]
    %v136 = vld [vmem:[#allocation2 + $0x1f0] sm:$0xff]
    %v137 = vld [vmem:[#allocation2 + $0x1f8] sm:$0xff]
    %v138 = vld [vmem:[#allocation2 + $0x200] sm:$0xff]
    %v139 = vld [vmem:[#allocation2 + $0x208] sm:$0xff]
    %v140 = vld [vmem:[#allocation2 + $0x210] sm:$0xff]
    %v141 = vld [vmem:[#allocation2 + $0x218] sm:$0xff]
    %v142 = vld [vmem:[#allocation2 + $0x220] sm:$0xff]
    %v143 = vld [vmem:[#allocation2 + $0x228] sm:$0xff]
    %v144 = vld [vmem:[#allocation2 + $0x230] sm:$0xff]
    %v145 = vld [vmem:[#allocation2 + $0x238] sm:$0xff]
    %v146 = vld [vmem:[#allocation2 + $0x240] sm:$0xff]
    %v147 = vld [vmem:[#allocation2 + $0x248] sm:$0xff]
    %v148 = vld [vmem:[#allocation2 + $0x250] sm:$0xff]
    %v149 = vld [vmem:[#allocation2 + $0x258] sm:$0xff]
    %v150 = vld [vmem:[#allocation2 + $0x260] sm:$0xff]
    %v151 = vld [vmem:[#allocation2 + $0x268] sm:$0xff]
    %v152 = vld [vmem:[#allocation2 + $0x270] sm:$0xff]
    %v153 = vld [vmem:[#allocation2 + $0x278] sm:$0xff]
    %v154 = vld [vmem:[#allocation2 + $0x280] sm:$0xff]
    %v155 = vld [vmem:[#allocation2 + $0x288] sm:$0xff]
    %v156 = vld [vmem:[#allocation2 + $0x290] sm:$0xff]
    %v157 = vld [vmem:[#allocation2 + $0x298] sm:$0xff]
    %v158 = vld [vmem:[#allocation2 + $0x2a0] sm:$0xff]
    %v159 = vld [vmem:[#allocation2 + $0x2a8] sm:$0xff]
    %v160 = vld [vmem:[#allocation2 + $0x2b0] sm:$0xff]
    %v161 = vld [vmem:[#allocation2 + $0x2b8] sm:$0xff]
    %v162 = vld [vmem:[#allocation2 + $0x2c0] sm:$0xff]
    %v163 = vld [vmem:[#allocation2 + $0x2c8] sm:$0xff]
    %v164 = vld [vmem:[#allocation2 + $0x2d0] sm:$0xff]
    %v165 = vld [vmem:[#allocation2 + $0x2d8] sm:$0xff]
    %v166 = vld [vmem:[#allocation2 + $0x2e0] sm:$0xff]
    %v167 = vld [vmem:[#allocation2 + $0x2e8] sm:$0xff]
    %v168 = vld [vmem:[#allocation2 + $0x2f0] sm:$0xff]
    %v169 = vld [vmem:[#allocation2 + $0x2f8] sm:$0xff]
    %v170 = vld [vmem:[#allocation2 + $0x300] sm:$0xff]
    %v171 = vld [vmem:[#allocation2 + $0x308] sm:$0xff]
    %v172 = vld [vmem:[#allocation2 + $0x310] sm:$0xff]
    %v173 = vld [vmem:[#allocation2 + $0x318] sm:$0xff]
    %v174 = vld [vmem:[#allocation2 + $0x320] sm:$0xff]
    %v175 = vld [vmem:[#allocation2 + $0x328] sm:$0xff]
    %v176 = vld [vmem:[#allocation2 + $0x330] sm:$0xff]
    %v177 = vld [vmem:[#allocation2 + $0x338] sm:$0xff]
    %v178 = vld [vmem:[#allocation2 + $0x340] sm:$0xff]
    %v179 = vld [vmem:[#allocation2 + $0x348] sm:$0xff]
    %v180 = vld [vmem:[#allocation2 + $0x350] sm:$0xff]
    %v181 = vld [vmem:[#allocation2 + $0x358] sm:$0xff]
    %v182 = vld [vmem:[#allocation2 + $0x360] sm:$0xff]
    %v183 = vld [vmem:[#allocation2 + $0x368] sm:$0xff]
    %v184 = vld [vmem:[#allocation2 + $0x370] sm:$0xff]
    %v185 = vld [vmem:[#allocation2 + $0x378] sm:$0xff]
    %v186 = vld [vmem:[#allocation2 + $0x380] sm:$0xff]
    %v187 = vld [vmem:[#allocation2 + $0x388] sm:$0xff]
    %v188 = vld [vmem:[#allocation2 + $0x390] sm:$0xff]
    %v189 = vld [vmem:[#allocation2 + $0x398] sm:$0xff]
    %v190 = vld [vmem:[#allocation2 + $0x3a0] sm:$0xff]
    %v191 = vld [vmem:[#allocation2 + $0x3a8] sm:$0xff]
    %v192 = vld [vmem:[#allocation2 + $0x3b0] sm:$0xff]
    %v193 = vld [vmem:[#allocation2 + $0x3b8] sm:$0xff]
    %v194 = vld [vmem:[#allocation2 + $0x3c0] sm:$0xff]
    %v195 = vld [vmem:[#allocation2 + $0x3c8] sm:$0xff]
    %v196 = vld [vmem:[#allocation2 + $0x3d0] sm:$0xff]
    %v197 = vld [vmem:[#allocation2 + $0x3d8] sm:$0xff]
    %v198 = vld [vmem:[#allocation2 + $0x3e0] sm:$0xff]
    %v199 = vld [vmem:[#allocation2 + $0x3e8] sm:$0xff]
    %v200 = vld [vmem:[#allocation2 + $0x3f0] sm:$0xff]
    %v201 = vld [vmem:[#allocation2 + $0x3f8] sm:$0xff]
    %202 = vmatprep.subr.mxu0 %v75
    %203 = vmatpush1.msra.mxu0 %v74
    %204 = vmatprep.subr.mxu0 %v83
    %205 = vmatpush1.msra.mxu0 %v82
    %206 = vmatprep.subr.mxu0 %v91
    %207 = vmatpush1.msra.mxu0 %v90
    %208 = vmatprep.subr.mxu0 %v99
    %209 = vmatpush1.msra.mxu0 %v98
    %210 = vmatprep.subr.mxu0 %v107
    %211 = vmatpush1.msra.mxu0 %v106
    %212 = vmatprep.subr.mxu0 %v115
    %213 = vmatpush1.msra.mxu0 %v114
    %214 = vmatprep.subr.mxu0 %v123
    %215 = vmatpush1.msra.mxu0 %v122
    %216 = vmatprep.subr.mxu0 %v131
    %217 = vmatpush1.msra.mxu0 %v130
    %218 = vmatprep.subr.mxu0 %v139
    %219 = vmatpush1.msra.mxu0 %v138
    %220 = vmatprep.subr.mxu0 %v147
    %221 = vmatpush1.msra.mxu0 %v146
    %222 = vmatprep.subr.mxu0 %v155
    %223 = vmatpush1.msra.mxu0 %v154
    %224 = vmatprep.subr.mxu0 %v163
    %225 = vmatpush1.msra.mxu0 %v162
    %226 = vmatprep.subr.mxu0 %v171
    %227 = vmatpush1.msra.mxu0 %v170
    %228 = vmatprep.subr.mxu0 %v179
    %229 = vmatpush1.msra.mxu0 %v178
    %230 = vmatprep.subr.mxu0 %v187
    %231 = vmatpush1.msra.mxu0 %v186
    %232 = vmatprep.subr.mxu0 %v195
    %233 = vmatpush1.msra.mxu0 %v194
    %234 = vmatprep.subr.mxu0 0.0
    %235 = vmatpush1.msra.mxu0 0.0
    %236 = vmatprep.subr.mxu0 0.0
    %237 = vmatpush1.msra.mxu0 0.0
    %238 = vmatprep.subr.mxu0 0.0
    %239 = vmatpush1.msra.mxu0 0.0
    %240 = vmatprep.subr.mxu0 0.0
    %241 = vmatpush1.msra.mxu0 0.0
    %242 = vmatprep.subr.mxu0 0.0
    %243 = vmatpush1.msra.mxu0 0.0
    %244 = vmatprep.subr.mxu0 0.0
    %245 = vmatpush1.msra.mxu0 0.0
    %246 = vmatprep.subr.mxu0 0.0
    %247 = vmatpush1.msra.mxu0 0.0
    %248 = vmatprep.subr.mxu0 0.0
    %249 = vmatpush1.msra.mxu0 0.0
    %250 = vmatprep.subr.mxu0 0.0
    %251 = vmatpush1.msra.mxu0 0.0
    %252 = vmatprep.subr.mxu0 0.0
    %253 = vmatpush1.msra.mxu0 0.0
    %254 = vmatprep.subr.mxu0 0.0
    %255 = vmatpush1.msra.mxu0 0.0
    %256 = vmatprep.subr.mxu0 0.0
    %257 = vmatpush1.msra.mxu0 0.0
    %258 = vmatprep.subr.mxu0 0.0
    %259 = vmatpush1.msra.mxu0 0.0
    %260 = vmatprep.subr.mxu0 0.0
    %261 = vmatpush1.msra.mxu0 0.0
    %262 = vmatprep.subr.mxu0 0.0
    %263 = vmatpush1.msra.mxu0 0.0
    %264 = vmatprep.subr.mxu0 0.0
    %265 = vmatpush1.msra.mxu0 0.0
    %266 = vmatprep.mubr.f32.mxu0 0.0
    %267 = vmatmul.mubr.f32.gmra.mrb[0].mxu0 %v72
    %v268 = vpop.f32.mrb[0].mxu0
    %v269 = vadd.f32 0.0, %v268
    %v270 = vpop.f32.mrb[0].mxu0
    %v271 = vadd.f32 0.0, %v270
    %272 = vmatprep.mubr.f32.mxu0 0.0
    %273 = vmatmul.mubr.f32.gmra.mrb[0].mxu0 %v73
    %v274 = vpop.f32.mrb[0].mxu0
    %v275 = vadd.f32 0.0, %v274
    %v276 = vpop.f32.mrb[0].mxu0
    %v277 = vadd.f32 0.0, %v276
    %278 = vdwg.mxu0
    %279 = vmatprep.subr.mxu0 %v77
    %280 = vmatpush1.msra.mxu0 %v76
    %281 = vmatprep.subr.mxu0 %v85
    %282 = vmatpush1.msra.mxu0 %v84
    %283 = vmatprep.subr.mxu0 %v93
    %284 = vmatpush1.msra.mxu0 %v92
    %285 = vmatprep.subr.mxu0 %v101
    %286 = vmatpush1.msra.mxu0 %v100
    %287 = vmatprep.subr.mxu0 %v109
    %288 = vmatpush1.msra.mxu0 %v108
    %289 = vmatprep.subr.mxu0 %v117
    %290 = vmatpush1.msra.mxu0 %v116
    %291 = vmatprep.subr.mxu0 %v125
    %292 = vmatpush1.msra.mxu0 %v124
    %293 = vmatprep.subr.mxu0 %v133
    %294 = vmatpush1.msra.mxu0 %v132
    %295 = vmatprep.subr.mxu0 %v141
    %296 = vmatpush1.msra.mxu0 %v140
    %297 = vmatprep.subr.mxu0 %v149
    %298 = vmatpush1.msra.mxu0 %v148
    %299 = vmatprep.subr.mxu0 %v157
    %300 = vmatpush1.msra.mxu0 %v156
    %301 = vmatprep.subr.mxu0 %v165
    %302 = vmatpush1.msra.mxu0 %v164
    %303 = vmatprep.subr.mxu0 %v173
    %304 = vmatpush1.msra.mxu0 %v172
    %305 = vmatprep.subr.mxu0 %v181
    %306 = vmatpush1.msra.mxu0 %v180
    %307 = vmatprep.subr.mxu0 %v189
    %308 = vmatpush1.msra.mxu0 %v188
    %309 = vmatprep.subr.mxu0 %v197
    %310 = vmatpush1.msra.mxu0 %v196
    %311 = vmatprep.subr.mxu0 0.0
    %312 = vmatpush1.msra.mxu0 0.0
    %313 = vmatprep.subr.mxu0 0.0
    %314 = vmatpush1.msra.mxu0 0.0
    %315 = vmatprep.subr.mxu0 0.0
    %316 = vmatpush1.msra.mxu0 0.0
    %317 = vmatprep.subr.mxu0 0.0
    %318 = vmatpush1.msra.mxu0 0.0
    %319 = vmatprep.subr.mxu0 0.0
    %320 = vmatpush1.msra.mxu0 0.0
    %321 = vmatprep.subr.mxu0 0.0
    %322 = vmatpush1.msra.mxu0 0.0
    %323 = vmatprep.subr.mxu0 0.0
    %324 = vmatpush1.msra.mxu0 0.0
    %325 = vmatprep.subr.mxu0 0.0
    %326 = vmatpush1.msra.mxu0 0.0
    %327 = vmatprep.subr.mxu0 0.0
    %328 = vmatpush1.msra.mxu0 0.0
    %329 = vmatprep.subr.mxu0 0.0
    %330 = vmatpush1.msra.mxu0 0.0
    %331 = vmatprep.subr.mxu0 0.0
    %332 = vmatpush1.msra.mxu0 0.0
    %333 = vmatprep.subr.mxu0 0.0
    %334 = vmatpush1.msra.mxu0 0.0
    %335 = vmatprep.subr.mxu0 0.0
    %336 = vmatpush1.msra.mxu0 0.0
    %337 = vmatprep.subr.mxu0 0.0
    %338 = vmatpush1.msra.mxu0 0.0
    %339 = vmatprep.subr.mxu0 0.0
    %340 = vmatpush1.msra.mxu0 0.0
    %341 = vmatprep.subr.mxu0 0.0
    %342 = vmatpush1.msra.mxu0 0.0
    %343 = vmatprep.mubr.f32.mxu0 0.0
    %344 = vmatmul.mubr.f32.gmra.mrb[0].mxu0 %v72
    %v345 = vpop.f32.mrb[0].mxu0
    %v346 = vadd.f32 0.0, %v345
    %v347 = vpop.f32.mrb[0].mxu0
    %v348 = vadd.f32 0.0, %v347
    %349 = vmatprep.mubr.f32.mxu0 0.0
    %350 = vmatmul.mubr.f32.gmra.mrb[0].mxu0 %v73
    %v351 = vpop.f32.mrb[0].mxu0
    %v352 = vadd.f32 0.0, %v351
    %v353 = vpop.f32.mrb[0].mxu0
    %v354 = vadd.f32 0.0, %v353
    %355 = vdwg.mxu0
    %356 = vmatprep.subr.mxu0 %v79
    %357 = vmatpush1.msra.mxu0 %v78
    %358 = vmatprep.subr.mxu0 %v87
    %359 = vmatpush1.msra.mxu0 %v86
    %360 = vmatprep.subr.mxu0 %v95
    %361 = vmatpush1.msra.mxu0 %v94
    %362 = vmatprep.subr.mxu0 %v103
    %363 = vmatpush1.msra.mxu0 %v102
    %364 = vmatprep.subr.mxu0 %v111
    %365 = vmatpush1.msra.mxu0 %v110
    %366 = vmatprep.subr.mxu0 %v119
    %367 = vmatpush1.msra.mxu0 %v118
    %368 = vmatprep.subr.mxu0 %v127
    %369 = vmatpush1.msra.mxu0 %v126
    %370 = vmatprep.subr.mxu0 %v135
    %371 = vmatpush1.msra.mxu0 %v134
    %372 = vmatprep.subr.mxu0 %v143
    %373 = vmatpush1.msra.mxu0 %v142
    %374 = vmatprep.subr.mxu0 %v151
    %375 = vmatpush1.msra.mxu0 %v150
    %376 = vmatprep.subr.mxu0 %v159
    %377 = vmatpush1.msra.mxu0 %v158
    %378 = vmatprep.subr.mxu0 %v167
    %379 = vmatpush1.msra.mxu0 %v166
    %380 = vmatprep.subr.mxu0 %v175
    %381 = vmatpush1.msra.mxu0 %v174
    %382 = vmatprep.subr.mxu0 %v183
    %383 = vmatpush1.msra.mxu0 %v182
    %384 = vmatprep.subr.mxu0 %v191
    %385 = vmatpush1.msra.mxu0 %v190
    %386 = vmatprep.subr.mxu0 %v199
    %387 = vmatpush1.msra.mxu0 %v198
    %388 = vmatprep.subr.mxu0 0.0
    %389 = vmatpush1.msra.mxu0 0.0
    %390 = vmatprep.subr.mxu0 0.0
    %391 = vmatpush1.msra.mxu0 0.0
    %392 = vmatprep.subr.mxu0 0.0
    %393 = vmatpush1.msra.mxu0 0.0
    %394 = vmatprep.subr.mxu0 0.0
    %395 = vmatpush1.msra.mxu0 0.0
    %396 = vmatprep.subr.mxu0 0.0
    %397 = vmatpush1.msra.mxu0 0.0
    %398 = vmatprep.subr.mxu0 0.0
    %399 = vmatpush1.msra.mxu0 0.0
    %400 = vmatprep.subr.mxu0 0.0
    %401 = vmatpush1.msra.mxu0 0.0
    %402 = vmatprep.subr.mxu0 0.0
    %403 = vmatpush1.msra.mxu0 0.0
    %404 = vmatprep.subr.mxu0 0.0
    %405 = vmatpush1.msra.mxu0 0.0
    %406 = vmatprep.subr.mxu0 0.0
    %407 = vmatpush1.msra.mxu0 0.0
    %408 = vmatprep.subr.mxu0 0.0
    %409 = vmatpush1.msra.mxu0 0.0
    %410 = vmatprep.subr.mxu0 0.0
    %411 = vmatpush1.msra.mxu0 0.0
    %412 = vmatprep.subr.mxu0 0.0
    %413 = vmatpush1.msra.mxu0 0.0
    %414 = vmatprep.subr.mxu0 0.0
    %415 = vmatpush1.msra.mxu0 0.0
    %416 = vmatprep.subr.mxu0 0.0
    %417 = vmatpush1.msra.mxu0 0.0
    %418 = vmatprep.subr.mxu0 0.0
    %419 = vmatpush1.msra.mxu0 0.0
    %420 = vmatprep.mubr.f32.mxu0 0.0
    %421 = vmatmul.mubr.f32.gmra.mrb[0].mxu0 %v72
    %v422 = vpop.f32.mrb[0].mxu0
    %v423 = vadd.f32 0.0, %v422
    %v424 = vpop.f32.mrb[0].mxu0
    %v425 = vadd.f32 0.0, %v424
    %426 = vmatprep.mubr.f32.mxu0 0.0
    %427 = vmatmul.mubr.f32.gmra.mrb[0].mxu0 %v73
    %v428 = vpop.f32.mrb[0].mxu0
    %v429 = vadd.f32 0.0, %v428
    %v430 = vpop.f32.mrb[0].mxu0
    %v431 = vadd.f32 0.0, %v430
    %432 = vdwg.mxu0
    %433 = vmatprep.subr.mxu0 %v81
    %434 = vmatpush1.msra.mxu0 %v80
    %435 = vmatprep.subr.mxu0 %v89
    %436 = vmatpush1.msra.mxu0 %v88
    %437 = vmatprep.subr.mxu0 %v97
    %438 = vmatpush1.msra.mxu0 %v96
    %439 = vmatprep.subr.mxu0 %v105
    %440 = vmatpush1.msra.mxu0 %v104
    %441 = vmatprep.subr.mxu0 %v113
    %442 = vmatpush1.msra.mxu0 %v112
    %443 = vmatprep.subr.mxu0 %v121
    %444 = vmatpush1.msra.mxu0 %v120
    %445 = vmatprep.subr.mxu0 %v129
    %446 = vmatpush1.msra.mxu0 %v128
    %447 = vmatprep.subr.mxu0 %v137
    %448 = vmatpush1.msra.mxu0 %v136
    %449 = vmatprep.subr.mxu0 %v145
    %450 = vmatpush1.msra.mxu0 %v144
    %451 = vmatprep.subr.mxu0 %v153
    %452 = vmatpush1.msra.mxu0 %v152
    %453 = vmatprep.subr.mxu0 %v161
    %454 = vmatpush1.msra.mxu0 %v160
    %455 = vmatprep.subr.mxu0 %v169
    %456 = vmatpush1.msra.mxu0 %v168
    %457 = vmatprep.subr.mxu0 %v177
    %458 = vmatpush1.msra.mxu0 %v176
    %459 = vmatprep.subr.mxu0 %v185
    %460 = vmatpush1.msra.mxu0 %v184
    %461 = vmatprep.subr.mxu0 %v193
    %462 = vmatpush1.msra.mxu0 %v192
    %463 = vmatprep.subr.mxu0 %v201
    %464 = vmatpush1.msra.mxu0 %v200
    %465 = vmatprep.subr.mxu0 0.0
    %466 = vmatpush1.msra.mxu0 0.0
    %467 = vmatprep.subr.mxu0 0.0
    %468 = vmatpush1.msra.mxu0 0.0
    %469 = vmatprep.subr.mxu0 0.0
    %470 = vmatpush1.msra.mxu0 0.0
    %471 = vmatprep.subr.mxu0 0.0
    %472 = vmatpush1.msra.mxu0 0.0
    %473 = vmatprep.subr.mxu0 0.0
    %474 = vmatpush1.msra.mxu0 0.0
    %475 = vmatprep.subr.mxu0 0.0
    %476 = vmatpush1.msra.mxu0 0.0
    %477 = vmatprep.subr.mxu0 0.0
    %478 = vmatpush1.msra.mxu0 0.0
    %479 = vmatprep.subr.mxu0 0.0
    %480 = vmatpush1.msra.mxu0 0.0
    %481 = vmatprep.subr.mxu0 0.0
    %482 = vmatpush1.msra.mxu0 0.0
    %483 = vmatprep.subr.mxu0 0.0
    %484 = vmatpush1.msra.mxu0 0.0
    %485 = vmatprep.subr.mxu0 0.0
    %486 = vmatpush1.msra.mxu0 0.0
    %487 = vmatprep.subr.mxu0 0.0
    %488 = vmatpush1.msra.mxu0 0.0
    %489 = vmatprep.subr.mxu0 0.0
    %490 = vmatpush1.msra.mxu0 0.0
    %491 = vmatprep.subr.mxu0 0.0
    %492 = vmatpush1.msra.mxu0 0.0
    %493 = vmatprep.subr.mxu0 0.0
    %494 = vmatpush1.msra.mxu0 0.0
    %495 = vmatprep.subr.mxu0 0.0
    %496 = vmatpush1.msra.mxu0 0.0
    %497 = vmatprep.mubr.f32.mxu0 0.0
    %498 = vmatmul.mubr.f32.gmra.mrb[0].mxu0 %v72
    %v499 = vpop.f32.mrb[0].mxu0
    %v500 = vadd.f32 0.0, %v499
    %v501 = vpop.f32.mrb[0].mxu0
    %v502 = vadd.f32 0.0, %v501
    %503 = vmatprep.mubr.f32.mxu0 0.0
    %504 = vmatmul.mubr.f32.gmra.mrb[0].mxu0 %v73
    %v505 = vpop.f32.mrb[0].mxu0
    %v506 = vadd.f32 0.0, %v505
    %v507 = vpop.f32.mrb[0].mxu0
    %v508 = vadd.f32 0.0, %v507
    %509 = vdwg.mxu0
    %v510 = vld [vmem:[%s4] sm:$0xff]
    %v512 = vlaneseq
    %v513 = vshrl.u32 %v512, 7
    %v514 = vsub.s32 0, %v513
    %v515 = vrot.slane %v510, %v514
    %v516 = vlaneseq
    %v517 = vshrl.u32 %v516, 7
    %v518 = vsub.s32 1, %v517
    %v519 = vrot.slane %v510, %v518
    %v520 = vlaneseq
    %v521 = vshrl.u32 %v520, 7
    %v522 = vsub.s32 2, %v521
    %v523 = vrot.slane %v510, %v522
    %v524 = vlaneseq
    %v525 = vshrl.u32 %v524, 7
    %v526 = vsub.s32 3, %v525
    %v527 = vrot.slane %v510, %v526
    %v528 = vlaneseq
    %v529 = vshrl.u32 %v528, 7
    %v530 = vsub.s32 4, %v529
    %v531 = vrot.slane %v510, %v530
    %v532 = vlaneseq
    %v533 = vshrl.u32 %v532, 7
    %v534 = vsub.s32 5, %v533
    %v535 = vrot.slane %v510, %v534
    %v536 = vlaneseq
    %v537 = vshrl.u32 %v536, 7
    %v538 = vsub.s32 6, %v537
    %v539 = vrot.slane %v510, %v538
    %v540 = vlaneseq
    %v541 = vshrl.u32 %v540, 7
    %v542 = vsub.s32 7, %v541
    %v543 = vrot.slane %v510, %v542
    %v552 = vmul.f32 %v423, %v515
    %v553 = vmul.f32 %v425, %v519
    %v554 = vmul.f32 %v500, %v523
    %v555 = vmul.f32 %v502, %v527
    %v556 = vmul.f32 %v269, %v531
    %v557 = vmul.f32 %v271, %v535
    %v558 = vmul.f32 %v346, %v539
    %v559 = vmul.f32 %v348, %v543
    %v560 = vmul.f32 %v429, %v515
    %v561 = vmul.f32 %v431, %v519
    %v562 = vmul.f32 %v506, %v523
    %v563 = vmul.f32 %v508, %v527
    %v564 = vmul.f32 %v275, %v531
    %v565 = vmul.f32 %v277, %v535
    %v566 = vmul.f32 %v352, %v539
    %v567 = vmul.f32 %v354, %v543
    %v568 = vld [vmem:[%s2] sm:$0xff]
    %v569 = vld [vmem:[%s2 + $0x8] sm:$0xff]
    %v570 = vld [vmem:[%s3] sm:$0xff]
    %v571 = vld [vmem:[%s3 + $0x8] sm:$0xff]
    %vm572 = vcmask 130048
    %v574 = vsel %vm572, %v570, 0
    %v577 = vsel %vm572, %v571, 0
    %579 = vmatprep.subr.mxu0 %v553
    %580 = vmatpush1.msra.mxu0 %v552
    %581 = vmatprep.subr.mxu0 %v561
    %582 = vmatpush1.msra.mxu0 %v560
    %583 = vmatprep.subr.mxu0 0.0
    %584 = vmatpush1.msra.mxu0 0.0
    %585 = vmatprep.subr.mxu0 0.0
    %586 = vmatpush1.msra.mxu0 0.0
    %587 = vmatprep.subr.mxu0 0.0
    %588 = vmatpush1.msra.mxu0 0.0
    %589 = vmatprep.subr.mxu0 0.0
    %590 = vmatpush1.msra.mxu0 0.0
    %591 = vmatprep.subr.mxu0 0.0
    %592 = vmatpush1.msra.mxu0 0.0
    %593 = vmatprep.subr.mxu0 0.0
    %594 = vmatpush1.msra.mxu0 0.0
    %595 = vmatprep.subr.mxu0 0.0
    %596 = vmatpush1.msra.mxu0 0.0
    %597 = vmatprep.subr.mxu0 0.0
    %598 = vmatpush1.msra.mxu0 0.0
    %599 = vmatprep.subr.mxu0 0.0
    %600 = vmatpush1.msra.mxu0 0.0
    %601 = vmatprep.subr.mxu0 0.0
    %602 = vmatpush1.msra.mxu0 0.0
    %603 = vmatprep.subr.mxu0 0.0
    %604 = vmatpush1.msra.mxu0 0.0
    %605 = vmatprep.subr.mxu0 0.0
    %606 = vmatpush1.msra.mxu0 0.0
    %607 = vmatprep.subr.mxu0 0.0
    %608 = vmatpush1.msra.mxu0 0.0
    %609 = vmatprep.subr.mxu0 0.0
    %610 = vmatpush1.msra.mxu0 0.0
    %611 = vmatprep.subr.mxu0 0.0
    %612 = vmatpush1.msra.mxu0 0.0
    %613 = vmatprep.subr.mxu0 0.0
    %614 = vmatpush1.msra.mxu0 0.0
    %615 = vmatprep.subr.mxu0 0.0
    %616 = vmatpush1.msra.mxu0 0.0
    %617 = vmatprep.subr.mxu0 0.0
    %618 = vmatpush1.msra.mxu0 0.0
    %619 = vmatprep.subr.mxu0 0.0
    %620 = vmatpush1.msra.mxu0 0.0
    %621 = vmatprep.subr.mxu0 0.0
    %622 = vmatpush1.msra.mxu0 0.0
    %623 = vmatprep.subr.mxu0 0.0
    %624 = vmatpush1.msra.mxu0 0.0
    %625 = vmatprep.subr.mxu0 0.0
    %626 = vmatpush1.msra.mxu0 0.0
    %627 = vmatprep.subr.mxu0 0.0
    %628 = vmatpush1.msra.mxu0 0.0
    %629 = vmatprep.subr.mxu0 0.0
    %630 = vmatpush1.msra.mxu0 0.0
    %631 = vmatprep.subr.mxu0 0.0
    %632 = vmatpush1.msra.mxu0 0.0
    %633 = vmatprep.subr.mxu0 0.0
    %634 = vmatpush1.msra.mxu0 0.0
    %635 = vmatprep.subr.mxu0 0.0
    %636 = vmatpush1.msra.mxu0 0.0
    %637 = vmatprep.subr.mxu0 0.0
    %638 = vmatpush1.msra.mxu0 0.0
    %639 = vmatprep.subr.mxu0 0.0
    %640 = vmatpush1.msra.mxu0 0.0
    %641 = vmatprep.subr.mxu0 0.0
    %642 = vmatpush1.msra.mxu0 0.0
    %643 = vmatprep.mubr.f32.mxu0 0.0
    %644 = vmatmul.mubr.f32.gmra.mrb[0].mxu0 %v574
    %v645 = vpop.f32.mrb[0].mxu0
    %v646 = vadd.f32 0.0, %v645
    %v647 = vpop.f32.mrb[0].mxu0
    %v648 = vadd.f32 0.0, %v647
    %649 = vmatprep.mubr.f32.mxu0 0.0
    %650 = vmatmul.mubr.f32.gmra.mrb[0].mxu0 %v577
    %v651 = vpop.f32.mrb[0].mxu0
    %v652 = vadd.f32 0.0, %v651
    %v653 = vpop.f32.mrb[0].mxu0
    %v654 = vadd.f32 0.0, %v653
    %655 = vdwg.mxu0
    %656 = vmatprep.subr.mxu0 %v555
    %657 = vmatpush1.msra.mxu0 %v554
    %658 = vmatprep.subr.mxu0 %v563
    %659 = vmatpush1.msra.mxu0 %v562
    %660 = vmatprep.subr.mxu0 0.0
    %661 = vmatpush1.msra.mxu0 0.0
    %662 = vmatprep.subr.mxu0 0.0
    %663 = vmatpush1.msra.mxu0 0.0
    %664 = vmatprep.subr.mxu0 0.0
    %665 = vmatpush1.msra.mxu0 0.0
    %666 = vmatprep.subr.mxu0 0.0
    %667 = vmatpush1.msra.mxu0 0.0
    %668 = vmatprep.subr.mxu0 0.0
    %669 = vmatpush1.msra.mxu0 0.0
    %670 = vmatprep.subr.mxu0 0.0
    %671 = vmatpush1.msra.mxu0 0.0
    %672 = vmatprep.subr.mxu0 0.0
    %673 = vmatpush1.msra.mxu0 0.0
    %674 = vmatprep.subr.mxu0 0.0
    %675 = vmatpush1.msra.mxu0 0.0
    %676 = vmatprep.subr.mxu0 0.0
    %677 = vmatpush1.msra.mxu0 0.0
    %678 = vmatprep.subr.mxu0 0.0
    %679 = vmatpush1.msra.mxu0 0.0
    %680 = vmatprep.subr.mxu0 0.0
    %681 = vmatpush1.msra.mxu0 0.0
    %682 = vmatprep.subr.mxu0 0.0
    %683 = vmatpush1.msra.mxu0 0.0
    %684 = vmatprep.subr.mxu0 0.0
    %685 = vmatpush1.msra.mxu0 0.0
    %686 = vmatprep.subr.mxu0 0.0
    %687 = vmatpush1.msra.mxu0 0.0
    %688 = vmatprep.subr.mxu0 0.0
    %689 = vmatpush1.msra.mxu0 0.0
    %690 = vmatprep.subr.mxu0 0.0
    %691 = vmatpush1.msra.mxu0 0.0
    %692 = vmatprep.subr.mxu0 0.0
    %693 = vmatpush1.msra.mxu0 0.0
    %694 = vmatprep.subr.mxu0 0.0
    %695 = vmatpush1.msra.mxu0 0.0
    %696 = vmatprep.subr.mxu0 0.0
    %697 = vmatpush1.msra.mxu0 0.0
    %698 = vmatprep.subr.mxu0 0.0
    %699 = vmatpush1.msra.mxu0 0.0
    %700 = vmatprep.subr.mxu0 0.0
    %701 = vmatpush1.msra.mxu0 0.0
    %702 = vmatprep.subr.mxu0 0.0
    %703 = vmatpush1.msra.mxu0 0.0
    %704 = vmatprep.subr.mxu0 0.0
    %705 = vmatpush1.msra.mxu0 0.0
    %706 = vmatprep.subr.mxu0 0.0
    %707 = vmatpush1.msra.mxu0 0.0
    %708 = vmatprep.subr.mxu0 0.0
    %709 = vmatpush1.msra.mxu0 0.0
    %710 = vmatprep.subr.mxu0 0.0
    %711 = vmatpush1.msra.mxu0 0.0
    %712 = vmatprep.subr.mxu0 0.0
    %713 = vmatpush1.msra.mxu0 0.0
    %714 = vmatprep.subr.mxu0 0.0
    %715 = vmatpush1.msra.mxu0 0.0
    %716 = vmatprep.subr.mxu0 0.0
    %717 = vmatpush1.msra.mxu0 0.0
    %718 = vmatprep.subr.mxu0 0.0
    %719 = vmatpush1.msra.mxu0 0.0
    %720 = vmatprep.mubr.f32.mxu0 0.0
    %721 = vmatmul.mubr.f32.gmra.mrb[0].mxu0 %v574
    %v722 = vpop.f32.mrb[0].mxu0
    %v723 = vadd.f32 0.0, %v722
    %v724 = vpop.f32.mrb[0].mxu0
    %v725 = vadd.f32 0.0, %v724
    %726 = vmatprep.mubr.f32.mxu0 0.0
    %727 = vmatmul.mubr.f32.gmra.mrb[0].mxu0 %v577
    %v728 = vpop.f32.mrb[0].mxu0
    %v729 = vadd.f32 0.0, %v728
    %v730 = vpop.f32.mrb[0].mxu0
    %v731 = vadd.f32 0.0, %v730
    %732 = vdwg.mxu0
    %733 = vmatprep.subr.mxu0 %v557
    %734 = vmatpush1.msra.mxu0 %v556
    %735 = vmatprep.subr.mxu0 %v565
    %736 = vmatpush1.msra.mxu0 %v564
    %737 = vmatprep.subr.mxu0 0.0
    %738 = vmatpush1.msra.mxu0 0.0
    %739 = vmatprep.subr.mxu0 0.0
    %740 = vmatpush1.msra.mxu0 0.0
    %741 = vmatprep.subr.mxu0 0.0
    %742 = vmatpush1.msra.mxu0 0.0
    %743 = vmatprep.subr.mxu0 0.0
    %744 = vmatpush1.msra.mxu0 0.0
    %745 = vmatprep.subr.mxu0 0.0
    %746 = vmatpush1.msra.mxu0 0.0
    %747 = vmatprep.subr.mxu0 0.0
    %748 = vmatpush1.msra.mxu0 0.0
    %749 = vmatprep.subr.mxu0 0.0
    %750 = vmatpush1.msra.mxu0 0.0
    %751 = vmatprep.subr.mxu0 0.0
    %752 = vmatpush1.msra.mxu0 0.0
    %753 = vmatprep.subr.mxu0 0.0
    %754 = vmatpush1.msra.mxu0 0.0
    %755 = vmatprep.subr.mxu0 0.0
    %756 = vmatpush1.msra.mxu0 0.0
    %757 = vmatprep.subr.mxu0 0.0
    %758 = vmatpush1.msra.mxu0 0.0
    %759 = vmatprep.subr.mxu0 0.0
    %760 = vmatpush1.msra.mxu0 0.0
    %761 = vmatprep.subr.mxu0 0.0
    %762 = vmatpush1.msra.mxu0 0.0
    %763 = vmatprep.subr.mxu0 0.0
    %764 = vmatpush1.msra.mxu0 0.0
    %765 = vmatprep.subr.mxu0 0.0
    %766 = vmatpush1.msra.mxu0 0.0
    %767 = vmatprep.subr.mxu0 0.0
    %768 = vmatpush1.msra.mxu0 0.0
    %769 = vmatprep.subr.mxu0 0.0
    %770 = vmatpush1.msra.mxu0 0.0
    %771 = vmatprep.subr.mxu0 0.0
    %772 = vmatpush1.msra.mxu0 0.0
    %773 = vmatprep.subr.mxu0 0.0
    %774 = vmatpush1.msra.mxu0 0.0
    %775 = vmatprep.subr.mxu0 0.0
    %776 = vmatpush1.msra.mxu0 0.0
    %777 = vmatprep.subr.mxu0 0.0
    %778 = vmatpush1.msra.mxu0 0.0
    %779 = vmatprep.subr.mxu0 0.0
    %780 = vmatpush1.msra.mxu0 0.0
    %781 = vmatprep.subr.mxu0 0.0
    %782 = vmatpush1.msra.mxu0 0.0
    %783 = vmatprep.subr.mxu0 0.0
    %784 = vmatpush1.msra.mxu0 0.0
    %785 = vmatprep.subr.mxu0 0.0
    %786 = vmatpush1.msra.mxu0 0.0
    %787 = vmatprep.subr.mxu0 0.0
    %788 = vmatpush1.msra.mxu0 0.0
    %789 = vmatprep.subr.mxu0 0.0
    %790 = vmatpush1.msra.mxu0 0.0
    %791 = vmatprep.subr.mxu0 0.0
    %792 = vmatpush1.msra.mxu0 0.0
    %793 = vmatprep.subr.mxu0 0.0
    %794 = vmatpush1.msra.mxu0 0.0
    %795 = vmatprep.subr.mxu0 0.0
    %796 = vmatpush1.msra.mxu0 0.0
    %797 = vmatprep.mubr.f32.mxu0 0.0
    %798 = vmatmul.mubr.f32.gmra.mrb[0].mxu0 %v574
    %v799 = vpop.f32.mrb[0].mxu0
    %v800 = vadd.f32 0.0, %v799
    %v801 = vpop.f32.mrb[0].mxu0
    %v802 = vadd.f32 0.0, %v801
    %803 = vmatprep.mubr.f32.mxu0 0.0
    %804 = vmatmul.mubr.f32.gmra.mrb[0].mxu0 %v577
    %v805 = vpop.f32.mrb[0].mxu0
    %v806 = vadd.f32 0.0, %v805
    %v807 = vpop.f32.mrb[0].mxu0
    %v808 = vadd.f32 0.0, %v807
    %809 = vdwg.mxu0
    %810 = vmatprep.subr.mxu0 %v559
    %811 = vmatpush1.msra.mxu0 %v558
    %812 = vmatprep.subr.mxu0 %v567
    %813 = vmatpush1.msra.mxu0 %v566
    %814 = vmatprep.subr.mxu0 0.0
    %815 = vmatpush1.msra.mxu0 0.0
    %816 = vmatprep.subr.mxu0 0.0
    %817 = vmatpush1.msra.mxu0 0.0
    %818 = vmatprep.subr.mxu0 0.0
    %819 = vmatpush1.msra.mxu0 0.0
    %820 = vmatprep.subr.mxu0 0.0
    %821 = vmatpush1.msra.mxu0 0.0
    %822 = vmatprep.subr.mxu0 0.0
    %823 = vmatpush1.msra.mxu0 0.0
    %824 = vmatprep.subr.mxu0 0.0
    %825 = vmatpush1.msra.mxu0 0.0
    %826 = vmatprep.subr.mxu0 0.0
    %827 = vmatpush1.msra.mxu0 0.0
    %828 = vmatprep.subr.mxu0 0.0
    %829 = vmatpush1.msra.mxu0 0.0
    %830 = vmatprep.subr.mxu0 0.0
    %831 = vmatpush1.msra.mxu0 0.0
    %832 = vmatprep.subr.mxu0 0.0
    %833 = vmatpush1.msra.mxu0 0.0
    %834 = vmatprep.subr.mxu0 0.0
    %835 = vmatpush1.msra.mxu0 0.0
    %836 = vmatprep.subr.mxu0 0.0
    %837 = vmatpush1.msra.mxu0 0.0
    %838 = vmatprep.subr.mxu0 0.0
    %839 = vmatpush1.msra.mxu0 0.0
    %840 = vmatprep.subr.mxu0 0.0
    %841 = vmatpush1.msra.mxu0 0.0
    %842 = vmatprep.subr.mxu0 0.0
    %843 = vmatpush1.msra.mxu0 0.0
    %844 = vmatprep.subr.mxu0 0.0
    %845 = vmatpush1.msra.mxu0 0.0
    %846 = vmatprep.subr.mxu0 0.0
    %847 = vmatpush1.msra.mxu0 0.0
    %848 = vmatprep.subr.mxu0 0.0
    %849 = vmatpush1.msra.mxu0 0.0
    %850 = vmatprep.subr.mxu0 0.0
    %851 = vmatpush1.msra.mxu0 0.0
    %852 = vmatprep.subr.mxu0 0.0
    %853 = vmatpush1.msra.mxu0 0.0
    %854 = vmatprep.subr.mxu0 0.0
    %855 = vmatpush1.msra.mxu0 0.0
    %856 = vmatprep.subr.mxu0 0.0
    %857 = vmatpush1.msra.mxu0 0.0
    %858 = vmatprep.subr.mxu0 0.0
    %859 = vmatpush1.msra.mxu0 0.0
    %860 = vmatprep.subr.mxu0 0.0
    %861 = vmatpush1.msra.mxu0 0.0
    %862 = vmatprep.subr.mxu0 0.0
    %863 = vmatpush1.msra.mxu0 0.0
    %864 = vmatprep.subr.mxu0 0.0
    %865 = vmatpush1.msra.mxu0 0.0
    %866 = vmatprep.subr.mxu0 0.0
    %867 = vmatpush1.msra.mxu0 0.0
    %868 = vmatprep.subr.mxu0 0.0
    %869 = vmatpush1.msra.mxu0 0.0
    %870 = vmatprep.subr.mxu0 0.0
    %871 = vmatpush1.msra.mxu0 0.0
    %872 = vmatprep.subr.mxu0 0.0
    %873 = vmatpush1.msra.mxu0 0.0
    %874 = vmatprep.mubr.f32.mxu0 0.0
    %875 = vmatmul.mubr.f32.gmra.mrb[0].mxu0 %v574
    %v876 = vpop.f32.mrb[0].mxu0
    %v877 = vadd.f32 0.0, %v876
    %v878 = vpop.f32.mrb[0].mxu0
    %v879 = vadd.f32 0.0, %v878
    %880 = vmatprep.mubr.f32.mxu0 0.0
    %881 = vmatmul.mubr.f32.gmra.mrb[0].mxu0 %v577
    %v882 = vpop.f32.mrb[0].mxu0
    %v883 = vadd.f32 0.0, %v882
    %v884 = vpop.f32.mrb[0].mxu0
    %v885 = vadd.f32 0.0, %v884
    %886 = vdwg.mxu0
    %v888 = vsel %vm572, %v568, 0
    %v891 = vsel %vm572, %v569, 0
    %893 = vmatprep.subr.mxu0 %v271
    %894 = vmatpush1.msra.mxu0 %v269
    %895 = vmatprep.subr.mxu0 %v277
    %896 = vmatpush1.msra.mxu0 %v275
    %897 = vmatprep.subr.mxu0 0.0
    %898 = vmatpush1.msra.mxu0 0.0
    %899 = vmatprep.subr.mxu0 0.0
    %900 = vmatpush1.msra.mxu0 0.0
    %901 = vmatprep.subr.mxu0 0.0
    %902 = vmatpush1.msra.mxu0 0.0
    %903 = vmatprep.subr.mxu0 0.0
    %904 = vmatpush1.msra.mxu0 0.0
    %905 = vmatprep.subr.mxu0 0.0
    %906 = vmatpush1.msra.mxu0 0.0
    %907 = vmatprep.subr.mxu0 0.0
    %908 = vmatpush1.msra.mxu0 0.0
    %909 = vmatprep.subr.mxu0 0.0
    %910 = vmatpush1.msra.mxu0 0.0
    %911 = vmatprep.subr.mxu0 0.0
    %912 = vmatpush1.msra.mxu0 0.0
    %913 = vmatprep.subr.mxu0 0.0
    %914 = vmatpush1.msra.mxu0 0.0
    %915 = vmatprep.subr.mxu0 0.0
    %916 = vmatpush1.msra.mxu0 0.0
    %917 = vmatprep.subr.mxu0 0.0
    %918 = vmatpush1.msra.mxu0 0.0
    %919 = vmatprep.subr.mxu0 0.0
    %920 = vmatpush1.msra.mxu0 0.0
    %921 = vmatprep.subr.mxu0 0.0
    %922 = vmatpush1.msra.mxu0 0.0
    %923 = vmatprep.subr.mxu0 0.0
    %924 = vmatpush1.msra.mxu0 0.0
    %925 = vmatprep.subr.mxu0 0.0
    %926 = vmatpush1.msra.mxu0 0.0
    %927 = vmatprep.subr.mxu0 0.0
    %928 = vmatpush1.msra.mxu0 0.0
    %929 = vmatprep.subr.mxu0 0.0
    %930 = vmatpush1.msra.mxu0 0.0
    %931 = vmatprep.subr.mxu0 0.0
    %932 = vmatpush1.msra.mxu0 0.0
    %933 = vmatprep.subr.mxu0 0.0
    %934 = vmatpush1.msra.mxu0 0.0
    %935 = vmatprep.subr.mxu0 0.0
    %936 = vmatpush1.msra.mxu0 0.0
    %937 = vmatprep.subr.mxu0 0.0
    %938 = vmatpush1.msra.mxu0 0.0
    %939 = vmatprep.subr.mxu0 0.0
    %940 = vmatpush1.msra.mxu0 0.0
    %941 = vmatprep.subr.mxu0 0.0
    %942 = vmatpush1.msra.mxu0 0.0
    %943 = vmatprep.subr.mxu0 0.0
    %944 = vmatpush1.msra.mxu0 0.0
    %945 = vmatprep.subr.mxu0 0.0
    %946 = vmatpush1.msra.mxu0 0.0
    %947 = vmatprep.subr.mxu0 0.0
    %948 = vmatpush1.msra.mxu0 0.0
    %949 = vmatprep.subr.mxu0 0.0
    %950 = vmatpush1.msra.mxu0 0.0
    %951 = vmatprep.subr.mxu0 0.0
    %952 = vmatpush1.msra.mxu0 0.0
    %953 = vmatprep.subr.mxu0 0.0
    %954 = vmatpush1.msra.mxu0 0.0
    %955 = vmatprep.subr.mxu0 0.0
    %956 = vmatpush1.msra.mxu0 0.0
    %957 = vmatprep.mubr.f32.mxu0 0.0
    %958 = vmatmul.mubr.f32.gmra.mrb[0].mxu0 %v888
    %v959 = vpop.f32.mrb[0].mxu0
    %v960 = vadd.f32 %v646, %v959
    %v961 = vpop.f32.mrb[0].mxu0
    %v962 = vadd.f32 %v648, %v961
    %963 = vmatprep.mubr.f32.mxu0 0.0
    %964 = vmatmul.mubr.f32.gmra.mrb[0].mxu0 %v891
    %v965 = vpop.f32.mrb[0].mxu0
    %v966 = vadd.f32 %v652, %v965
    %v967 = vpop.f32.mrb[0].mxu0
    %v968 = vadd.f32 %v654, %v967
    %969 = vdwg.mxu0
    %970 = vmatprep.subr.mxu0 %v348
    %971 = vmatpush1.msra.mxu0 %v346
    %972 = vmatprep.subr.mxu0 %v354
    %973 = vmatpush1.msra.mxu0 %v352
    %974 = vmatprep.subr.mxu0 0.0
    %975 = vmatpush1.msra.mxu0 0.0
    %976 = vmatprep.subr.mxu0 0.0
    %977 = vmatpush1.msra.mxu0 0.0
    %978 = vmatprep.subr.mxu0 0.0
    %979 = vmatpush1.msra.mxu0 0.0
    %980 = vmatprep.subr.mxu0 0.0
    %981 = vmatpush1.msra.mxu0 0.0
    %982 = vmatprep.subr.mxu0 0.0
    %983 = vmatpush1.msra.mxu0 0.0
    %984 = vmatprep.subr.mxu0 0.0
    %985 = vmatpush1.msra.mxu0 0.0
    %986 = vmatprep.subr.mxu0 0.0
    %987 = vmatpush1.msra.mxu0 0.0
    %988 = vmatprep.subr.mxu0 0.0
    %989 = vmatpush1.msra.mxu0 0.0
    %990 = vmatprep.subr.mxu0 0.0
    %991 = vmatpush1.msra.mxu0 0.0
    %992 = vmatprep.subr.mxu0 0.0
    %993 = vmatpush1.msra.mxu0 0.0
    %994 = vmatprep.subr.mxu0 0.0
    %995 = vmatpush1.msra.mxu0 0.0
    %996 = vmatprep.subr.mxu0 0.0
    %997 = vmatpush1.msra.mxu0 0.0
    %998 = vmatprep.subr.mxu0 0.0
    %999 = vmatpush1.msra.mxu0 0.0
    %1000 = vmatprep.subr.mxu0 0.0
    %1001 = vmatpush1.msra.mxu0 0.0
    %1002 = vmatprep.subr.mxu0 0.0
    %1003 = vmatpush1.msra.mxu0 0.0
    %1004 = vmatprep.subr.mxu0 0.0
    %1005 = vmatpush1.msra.mxu0 0.0
    %1006 = vmatprep.subr.mxu0 0.0
    %1007 = vmatpush1.msra.mxu0 0.0
    %1008 = vmatprep.subr.mxu0 0.0
    %1009 = vmatpush1.msra.mxu0 0.0
    %1010 = vmatprep.subr.mxu0 0.0
    %1011 = vmatpush1.msra.mxu0 0.0
    %1012 = vmatprep.subr.mxu0 0.0
    %1013 = vmatpush1.msra.mxu0 0.0
    %1014 = vmatprep.subr.mxu0 0.0
    %1015 = vmatpush1.msra.mxu0 0.0
    %1016 = vmatprep.subr.mxu0 0.0
    %1017 = vmatpush1.msra.mxu0 0.0
    %1018 = vmatprep.subr.mxu0 0.0
    %1019 = vmatpush1.msra.mxu0 0.0
    %1020 = vmatprep.subr.mxu0 0.0
    %1021 = vmatpush1.msra.mxu0 0.0
    %1022 = vmatprep.subr.mxu0 0.0
    %1023 = vmatpush1.msra.mxu0 0.0
    %1024 = vmatprep.subr.mxu0 0.0
    %1025 = vmatpush1.msra.mxu0 0.0
    %1026 = vmatprep.subr.mxu0 0.0
    %1027 = vmatpush1.msra.mxu0 0.0
    %1028 = vmatprep.subr.mxu0 0.0
    %1029 = vmatpush1.msra.mxu0 0.0
    %1030 = vmatprep.subr.mxu0 0.0
    %1031 = vmatpush1.msra.mxu0 0.0
    %1032 = vmatprep.subr.mxu0 0.0
    %1033 = vmatpush1.msra.mxu0 0.0
    %1034 = vmatprep.mubr.f32.mxu0 0.0
    %1035 = vmatmul.mubr.f32.gmra.mrb[0].mxu0 %v888
    %v1036 = vpop.f32.mrb[0].mxu0
    %v1037 = vadd.f32 %v723, %v1036
    %v1038 = vpop.f32.mrb[0].mxu0
    %v1039 = vadd.f32 %v725, %v1038
    %1040 = vmatprep.mubr.f32.mxu0 0.0
    %1041 = vmatmul.mubr.f32.gmra.mrb[0].mxu0 %v891
    %v1042 = vpop.f32.mrb[0].mxu0
    %v1043 = vadd.f32 %v729, %v1042
    %v1044 = vpop.f32.mrb[0].mxu0
    %v1045 = vadd.f32 %v731, %v1044
    %1046 = vdwg.mxu0
    %1047 = vmatprep.subr.mxu0 %v425
    %1048 = vmatpush1.msra.mxu0 %v423
    %1049 = vmatprep.subr.mxu0 %v431
    %1050 = vmatpush1.msra.mxu0 %v429
    %1051 = vmatprep.subr.mxu0 0.0
    %1052 = vmatpush1.msra.mxu0 0.0
    %1053 = vmatprep.subr.mxu0 0.0
    %1054 = vmatpush1.msra.mxu0 0.0
    %1055 = vmatprep.subr.mxu0 0.0
    %1056 = vmatpush1.msra.mxu0 0.0
    %1057 = vmatprep.subr.mxu0 0.0
    %1058 = vmatpush1.msra.mxu0 0.0
    %1059 = vmatprep.subr.mxu0 0.0
    %1060 = vmatpush1.msra.mxu0 0.0
    %1061 = vmatprep.subr.mxu0 0.0
    %1062 = vmatpush1.msra.mxu0 0.0
    %1063 = vmatprep.subr.mxu0 0.0
    %1064 = vmatpush1.msra.mxu0 0.0
    %1065 = vmatprep.subr.mxu0 0.0
    %1066 = vmatpush1.msra.mxu0 0.0
    %1067 = vmatprep.subr.mxu0 0.0
    %1068 = vmatpush1.msra.mxu0 0.0
    %1069 = vmatprep.subr.mxu0 0.0
    %1070 = vmatpush1.msra.mxu0 0.0
    %1071 = vmatprep.subr.mxu0 0.0
    %1072 = vmatpush1.msra.mxu0 0.0
    %1073 = vmatprep.subr.mxu0 0.0
    %1074 = vmatpush1.msra.mxu0 0.0
    %1075 = vmatprep.subr.mxu0 0.0
    %1076 = vmatpush1.msra.mxu0 0.0
    %1077 = vmatprep.subr.mxu0 0.0
    %1078 = vmatpush1.msra.mxu0 0.0
    %1079 = vmatprep.subr.mxu0 0.0
    %1080 = vmatpush1.msra.mxu0 0.0
    %1081 = vmatprep.subr.mxu0 0.0
    %1082 = vmatpush1.msra.mxu0 0.0
    %1083 = vmatprep.subr.mxu0 0.0
    %1084 = vmatpush1.msra.mxu0 0.0
    %1085 = vmatprep.subr.mxu0 0.0
    %1086 = vmatpush1.msra.mxu0 0.0
    %1087 = vmatprep.subr.mxu0 0.0
    %1088 = vmatpush1.msra.mxu0 0.0
    %1089 = vmatprep.subr.mxu0 0.0
    %1090 = vmatpush1.msra.mxu0 0.0
    %1091 = vmatprep.subr.mxu0 0.0
    %1092 = vmatpush1.msra.mxu0 0.0
    %1093 = vmatprep.subr.mxu0 0.0
    %1094 = vmatpush1.msra.mxu0 0.0
    %1095 = vmatprep.subr.mxu0 0.0
    %1096 = vmatpush1.msra.mxu0 0.0
    %1097 = vmatprep.subr.mxu0 0.0
    %1098 = vmatpush1.msra.mxu0 0.0
    %1099 = vmatprep.subr.mxu0 0.0
    %1100 = vmatpush1.msra.mxu0 0.0
    %1101 = vmatprep.subr.mxu0 0.0
    %1102 = vmatpush1.msra.mxu0 0.0
    %1103 = vmatprep.subr.mxu0 0.0
    %1104 = vmatpush1.msra.mxu0 0.0
    %1105 = vmatprep.subr.mxu0 0.0
    %1106 = vmatpush1.msra.mxu0 0.0
    %1107 = vmatprep.subr.mxu0 0.0
    %1108 = vmatpush1.msra.mxu0 0.0
    %1109 = vmatprep.subr.mxu0 0.0
    %1110 = vmatpush1.msra.mxu0 0.0
    %1111 = vmatprep.mubr.f32.mxu0 0.0
    %1112 = vmatmul.mubr.f32.gmra.mrb[0].mxu0 %v888
    %v1113 = vpop.f32.mrb[0].mxu0
    %v1114 = vadd.f32 %v800, %v1113
    %v1115 = vpop.f32.mrb[0].mxu0
    %v1116 = vadd.f32 %v802, %v1115
    %1117 = vmatprep.mubr.f32.mxu0 0.0
    %1118 = vmatmul.mubr.f32.gmra.mrb[0].mxu0 %v891
    %v1119 = vpop.f32.mrb[0].mxu0
    %v1120 = vadd.f32 %v806, %v1119
    %v1121 = vpop.f32.mrb[0].mxu0
    %v1122 = vadd.f32 %v808, %v1121
    %1123 = vdwg.mxu0
    %1124 = vmatprep.subr.mxu0 %v502
    %1125 = vmatpush1.msra.mxu0 %v500
    %1126 = vmatprep.subr.mxu0 %v508
    %1127 = vmatpush1.msra.mxu0 %v506
    %1128 = vmatprep.subr.mxu0 0.0
    %1129 = vmatpush1.msra.mxu0 0.0
    %1130 = vmatprep.subr.mxu0 0.0
    %1131 = vmatpush1.msra.mxu0 0.0
    %1132 = vmatprep.subr.mxu0 0.0
    %1133 = vmatpush1.msra.mxu0 0.0
    %1134 = vmatprep.subr.mxu0 0.0
    %1135 = vmatpush1.msra.mxu0 0.0
    %1136 = vmatprep.subr.mxu0 0.0
    %1137 = vmatpush1.msra.mxu0 0.0
    %1138 = vmatprep.subr.mxu0 0.0
    %1139 = vmatpush1.msra.mxu0 0.0
    %1140 = vmatprep.subr.mxu0 0.0
    %1141 = vmatpush1.msra.mxu0 0.0
    %1142 = vmatprep.subr.mxu0 0.0
    %1143 = vmatpush1.msra.mxu0 0.0
    %1144 = vmatprep.subr.mxu0 0.0
    %1145 = vmatpush1.msra.mxu0 0.0
    %1146 = vmatprep.subr.mxu0 0.0
    %1147 = vmatpush1.msra.mxu0 0.0
    %1148 = vmatprep.subr.mxu0 0.0
    %1149 = vmatpush1.msra.mxu0 0.0
    %1150 = vmatprep.subr.mxu0 0.0
    %1151 = vmatpush1.msra.mxu0 0.0
    %1152 = vmatprep.subr.mxu0 0.0
    %1153 = vmatpush1.msra.mxu0 0.0
    %1154 = vmatprep.subr.mxu0 0.0
    %1155 = vmatpush1.msra.mxu0 0.0
    %1156 = vmatprep.subr.mxu0 0.0
    %1157 = vmatpush1.msra.mxu0 0.0
    %1158 = vmatprep.subr.mxu0 0.0
    %1159 = vmatpush1.msra.mxu0 0.0
    %1160 = vmatprep.subr.mxu0 0.0
    %1161 = vmatpush1.msra.mxu0 0.0
    %1162 = vmatprep.subr.mxu0 0.0
    %1163 = vmatpush1.msra.mxu0 0.0
    %1164 = vmatprep.subr.mxu0 0.0
    %1165 = vmatpush1.msra.mxu0 0.0
    %1166 = vmatprep.subr.mxu0 0.0
    %1167 = vmatpush1.msra.mxu0 0.0
    %1168 = vmatprep.subr.mxu0 0.0
    %1169 = vmatpush1.msra.mxu0 0.0
    %1170 = vmatprep.subr.mxu0 0.0
    %1171 = vmatpush1.msra.mxu0 0.0
    %1172 = vmatprep.subr.mxu0 0.0
    %1173 = vmatpush1.msra.mxu0 0.0
    %1174 = vmatprep.subr.mxu0 0.0
    %1175 = vmatpush1.msra.mxu0 0.0
    %1176 = vmatprep.subr.mxu0 0.0
    %1177 = vmatpush1.msra.mxu0 0.0
    %1178 = vmatprep.subr.mxu0 0.0
    %1179 = vmatpush1.msra.mxu0 0.0
    %1180 = vmatprep.subr.mxu0 0.0
    %1181 = vmatpush1.msra.mxu0 0.0
    %1182 = vmatprep.subr.mxu0 0.0
    %1183 = vmatpush1.msra.mxu0 0.0
    %1184 = vmatprep.subr.mxu0 0.0
    %1185 = vmatpush1.msra.mxu0 0.0
    %1186 = vmatprep.subr.mxu0 0.0
    %1187 = vmatpush1.msra.mxu0 0.0
    %1188 = vmatprep.mubr.f32.mxu0 0.0
    %1189 = vmatmul.mubr.f32.gmra.mrb[0].mxu0 %v888
    %v1190 = vpop.f32.mrb[0].mxu0
    %v1191 = vadd.f32 %v877, %v1190
    %v1192 = vpop.f32.mrb[0].mxu0
    %v1193 = vadd.f32 %v879, %v1192
    %1194 = vmatprep.mubr.f32.mxu0 0.0
    %1195 = vmatmul.mubr.f32.gmra.mrb[0].mxu0 %v891
    %v1196 = vpop.f32.mrb[0].mxu0
    %v1197 = vadd.f32 %v883, %v1196
    %v1198 = vpop.f32.mrb[0].mxu0
    %v1199 = vadd.f32 %v885, %v1198
    %1200 = vdwg.mxu0
    %v1201 = vld [vmem:[%s5] sm:$0xff]
    %v1202 = vld [vmem:[%s5 + $0x8] sm:$0xff]
    %v1203 = vld [vmem:[%s5 + $0x10] sm:$0xff]
    %v1204 = vld [vmem:[%s5 + $0x18] sm:$0xff]
    %v1205 = vld [vmem:[%s5 + $0x20] sm:$0xff]
    %v1206 = vld [vmem:[%s5 + $0x28] sm:$0xff]
    %v1207 = vld [vmem:[%s5 + $0x30] sm:$0xff]
    %v1208 = vld [vmem:[%s5 + $0x38] sm:$0xff]
    %v1209 = vld [vmem:[%s6] sm:$0xff]
    %v1210 = vld [vmem:[%s6 + $0x8] sm:$0xff]
    %v1211 = vld [vmem:[%s6 + $0x10] sm:$0xff]
    %v1212 = vld [vmem:[%s6 + $0x18] sm:$0xff]
    %v1213 = vld [vmem:[%s6 + $0x20] sm:$0xff]
    %v1214 = vld [vmem:[%s6 + $0x28] sm:$0xff]
    %v1215 = vld [vmem:[%s6 + $0x30] sm:$0xff]
    %v1216 = vld [vmem:[%s6 + $0x38] sm:$0xff]
    %v1217 = vmul.f32 %v960, %v1201
    %v1218 = vmul.f32 %v962, %v1202
    %v1219 = vmul.f32 %v1037, %v1203
    %v1220 = vmul.f32 %v1039, %v1204
    %v1221 = vmul.f32 %v966, %v1205
    %v1222 = vmul.f32 %v968, %v1206
    %v1223 = vmul.f32 %v1043, %v1207
    %v1224 = vmul.f32 %v1045, %v1208
    %v1225 = vmul.f32 %v1114, %v1209
    %v1226 = vmul.f32 %v1116, %v1210
    %v1227 = vmul.f32 %v1191, %v1211
    %v1228 = vmul.f32 %v1193, %v1212
    %v1229 = vmul.f32 %v1120, %v1213
    %v1230 = vmul.f32 %v1122, %v1214
    %v1231 = vmul.f32 %v1197, %v1215
    %v1232 = vmul.f32 %v1199, %v1216
    %v1233 = vsub.f32 %v1217, %v1225
    %v1234 = vsub.f32 %v1218, %v1226
    %v1235 = vsub.f32 %v1219, %v1227
    %v1236 = vsub.f32 %v1220, %v1228
    %v1237 = vsub.f32 %v1221, %v1229
    %v1238 = vsub.f32 %v1222, %v1230
    %v1239 = vsub.f32 %v1223, %v1231
    %v1240 = vsub.f32 %v1224, %v1232
    %v1241 = vmul.f32 %v960, %v1209
    %v1242 = vmul.f32 %v962, %v1210
    %v1243 = vmul.f32 %v1037, %v1211
    %v1244 = vmul.f32 %v1039, %v1212
    %v1245 = vmul.f32 %v966, %v1213
    %v1246 = vmul.f32 %v968, %v1214
    %v1247 = vmul.f32 %v1043, %v1215
    %v1248 = vmul.f32 %v1045, %v1216
    %v1249 = vmul.f32 %v1114, %v1201
    %v1250 = vmul.f32 %v1116, %v1202
    %v1251 = vmul.f32 %v1191, %v1203
    %v1252 = vmul.f32 %v1193, %v1204
    %v1253 = vmul.f32 %v1120, %v1205
    %v1254 = vmul.f32 %v1122, %v1206
    %v1255 = vmul.f32 %v1197, %v1207
    %v1256 = vmul.f32 %v1199, %v1208
    %v1257 = vadd.f32 %v1241, %v1249
    %v1258 = vadd.f32 %v1242, %v1250
    %v1259 = vadd.f32 %v1243, %v1251
    %v1260 = vadd.f32 %v1244, %v1252
    %v1261 = vadd.f32 %v1245, %v1253
    %v1262 = vadd.f32 %v1246, %v1254
    %v1263 = vadd.f32 %v1247, %v1255
    %v1264 = vadd.f32 %v1248, %v1256
    %v1265 = vld [vmem:[#allocation4] sm:$0xff]
    %v1266 = vld [vmem:[#allocation4 + $0x8] sm:$0xff]
    %v1267 = vld [vmem:[#allocation4 + $0x10] sm:$0xff]
    %v1268 = vld [vmem:[#allocation4 + $0x18] sm:$0xff]
    %v1269 = vld [vmem:[#allocation4 + $0x20] sm:$0xff]
    %v1270 = vld [vmem:[#allocation4 + $0x28] sm:$0xff]
    %v1271 = vld [vmem:[#allocation4 + $0x30] sm:$0xff]
    %v1272 = vld [vmem:[#allocation4 + $0x38] sm:$0xff]
    %v1273 = vld [vmem:[#allocation4 + $0x40] sm:$0xff]
    %v1274 = vld [vmem:[#allocation4 + $0x48] sm:$0xff]
    %v1275 = vld [vmem:[#allocation4 + $0x50] sm:$0xff]
    %v1276 = vld [vmem:[#allocation4 + $0x58] sm:$0xff]
    %v1277 = vld [vmem:[#allocation4 + $0x60] sm:$0xff]
    %v1278 = vld [vmem:[#allocation4 + $0x68] sm:$0xff]
    %v1279 = vld [vmem:[#allocation4 + $0x70] sm:$0xff]
    %v1280 = vld [vmem:[#allocation4 + $0x78] sm:$0xff]
    %v1281 = vld [vmem:[#allocation4 + $0x80] sm:$0xff]
    %v1282 = vld [vmem:[#allocation4 + $0x88] sm:$0xff]
    %v1283 = vld [vmem:[#allocation4 + $0x90] sm:$0xff]
    %v1284 = vld [vmem:[#allocation4 + $0x98] sm:$0xff]
    %v1285 = vld [vmem:[#allocation4 + $0xa0] sm:$0xff]
    %v1286 = vld [vmem:[#allocation4 + $0xa8] sm:$0xff]
    %v1287 = vld [vmem:[#allocation4 + $0xb0] sm:$0xff]
    %v1288 = vld [vmem:[#allocation4 + $0xb8] sm:$0xff]
    %v1289 = vld [vmem:[#allocation4 + $0xc0] sm:$0xff]
    %v1290 = vld [vmem:[#allocation4 + $0xc8] sm:$0xff]
    %v1291 = vld [vmem:[#allocation4 + $0xd0] sm:$0xff]
    %v1292 = vld [vmem:[#allocation4 + $0xd8] sm:$0xff]
    %v1293 = vld [vmem:[#allocation4 + $0xe0] sm:$0xff]
    %v1294 = vld [vmem:[#allocation4 + $0xe8] sm:$0xff]
    %v1295 = vld [vmem:[#allocation4 + $0xf0] sm:$0xff]
    %v1296 = vld [vmem:[#allocation4 + $0xf8] sm:$0xff]
    %v1297 = vld [vmem:[#allocation4 + $0x100] sm:$0xff]
    %v1298 = vld [vmem:[#allocation4 + $0x108] sm:$0xff]
    %v1299 = vld [vmem:[#allocation4 + $0x110] sm:$0xff]
    %v1300 = vld [vmem:[#allocation4 + $0x118] sm:$0xff]
    %v1301 = vld [vmem:[#allocation4 + $0x120] sm:$0xff]
    %v1302 = vld [vmem:[#allocation4 + $0x128] sm:$0xff]
    %v1303 = vld [vmem:[#allocation4 + $0x130] sm:$0xff]
    %v1304 = vld [vmem:[#allocation4 + $0x138] sm:$0xff]
    %v1305 = vld [vmem:[#allocation4 + $0x140] sm:$0xff]
    %v1306 = vld [vmem:[#allocation4 + $0x148] sm:$0xff]
    %v1307 = vld [vmem:[#allocation4 + $0x150] sm:$0xff]
    %v1308 = vld [vmem:[#allocation4 + $0x158] sm:$0xff]
    %v1309 = vld [vmem:[#allocation4 + $0x160] sm:$0xff]
    %v1310 = vld [vmem:[#allocation4 + $0x168] sm:$0xff]
    %v1311 = vld [vmem:[#allocation4 + $0x170] sm:$0xff]
    %v1312 = vld [vmem:[#allocation4 + $0x178] sm:$0xff]
    %v1313 = vld [vmem:[#allocation4 + $0x180] sm:$0xff]
    %v1314 = vld [vmem:[#allocation4 + $0x188] sm:$0xff]
    %v1315 = vld [vmem:[#allocation4 + $0x190] sm:$0xff]
    %v1316 = vld [vmem:[#allocation4 + $0x198] sm:$0xff]
    %v1317 = vld [vmem:[#allocation4 + $0x1a0] sm:$0xff]
    %v1318 = vld [vmem:[#allocation4 + $0x1a8] sm:$0xff]
    %v1319 = vld [vmem:[#allocation4 + $0x1b0] sm:$0xff]
    %v1320 = vld [vmem:[#allocation4 + $0x1b8] sm:$0xff]
    %v1321 = vld [vmem:[#allocation4 + $0x1c0] sm:$0xff]
    %v1322 = vld [vmem:[#allocation4 + $0x1c8] sm:$0xff]
    %v1323 = vld [vmem:[#allocation4 + $0x1d0] sm:$0xff]
    %v1324 = vld [vmem:[#allocation4 + $0x1d8] sm:$0xff]
    %v1325 = vld [vmem:[#allocation4 + $0x1e0] sm:$0xff]
    %v1326 = vld [vmem:[#allocation4 + $0x1e8] sm:$0xff]
    %v1327 = vld [vmem:[#allocation4 + $0x1f0] sm:$0xff]
    %v1328 = vld [vmem:[#allocation4 + $0x1f8] sm:$0xff]
    %v1329 = vld [vmem:[#allocation4 + $0x200] sm:$0xff]
    %v1330 = vld [vmem:[#allocation4 + $0x208] sm:$0xff]
    %v1331 = vld [vmem:[#allocation4 + $0x210] sm:$0xff]
    %v1332 = vld [vmem:[#allocation4 + $0x218] sm:$0xff]
    %v1333 = vld [vmem:[#allocation4 + $0x220] sm:$0xff]
    %v1334 = vld [vmem:[#allocation4 + $0x228] sm:$0xff]
    %v1335 = vld [vmem:[#allocation4 + $0x230] sm:$0xff]
    %v1336 = vld [vmem:[#allocation4 + $0x238] sm:$0xff]
    %v1337 = vld [vmem:[#allocation4 + $0x240] sm:$0xff]
    %v1338 = vld [vmem:[#allocation4 + $0x248] sm:$0xff]
    %v1339 = vld [vmem:[#allocation4 + $0x250] sm:$0xff]
    %v1340 = vld [vmem:[#allocation4 + $0x258] sm:$0xff]
    %v1341 = vld [vmem:[#allocation4 + $0x260] sm:$0xff]
    %v1342 = vld [vmem:[#allocation4 + $0x268] sm:$0xff]
    %v1343 = vld [vmem:[#allocation4 + $0x270] sm:$0xff]
    %v1344 = vld [vmem:[#allocation4 + $0x278] sm:$0xff]
    %v1345 = vld [vmem:[#allocation4 + $0x280] sm:$0xff]
    %v1346 = vld [vmem:[#allocation4 + $0x288] sm:$0xff]
    %v1347 = vld [vmem:[#allocation4 + $0x290] sm:$0xff]
    %v1348 = vld [vmem:[#allocation4 + $0x298] sm:$0xff]
    %v1349 = vld [vmem:[#allocation4 + $0x2a0] sm:$0xff]
    %v1350 = vld [vmem:[#allocation4 + $0x2a8] sm:$0xff]
    %v1351 = vld [vmem:[#allocation4 + $0x2b0] sm:$0xff]
    %v1352 = vld [vmem:[#allocation4 + $0x2b8] sm:$0xff]
    %v1353 = vld [vmem:[#allocation4 + $0x2c0] sm:$0xff]
    %v1354 = vld [vmem:[#allocation4 + $0x2c8] sm:$0xff]
    %v1355 = vld [vmem:[#allocation4 + $0x2d0] sm:$0xff]
    %v1356 = vld [vmem:[#allocation4 + $0x2d8] sm:$0xff]
    %v1357 = vld [vmem:[#allocation4 + $0x2e0] sm:$0xff]
    %v1358 = vld [vmem:[#allocation4 + $0x2e8] sm:$0xff]
    %v1359 = vld [vmem:[#allocation4 + $0x2f0] sm:$0xff]
    %v1360 = vld [vmem:[#allocation4 + $0x2f8] sm:$0xff]
    %v1361 = vld [vmem:[#allocation4 + $0x300] sm:$0xff]
    %v1362 = vld [vmem:[#allocation4 + $0x308] sm:$0xff]
    %v1363 = vld [vmem:[#allocation4 + $0x310] sm:$0xff]
    %v1364 = vld [vmem:[#allocation4 + $0x318] sm:$0xff]
    %v1365 = vld [vmem:[#allocation4 + $0x320] sm:$0xff]
    %v1366 = vld [vmem:[#allocation4 + $0x328] sm:$0xff]
    %v1367 = vld [vmem:[#allocation4 + $0x330] sm:$0xff]
    %v1368 = vld [vmem:[#allocation4 + $0x338] sm:$0xff]
    %v1369 = vld [vmem:[#allocation4 + $0x340] sm:$0xff]
    %v1370 = vld [vmem:[#allocation4 + $0x348] sm:$0xff]
    %v1371 = vld [vmem:[#allocation4 + $0x350] sm:$0xff]
    %v1372 = vld [vmem:[#allocation4 + $0x358] sm:$0xff]
    %v1373 = vld [vmem:[#allocation4 + $0x360] sm:$0xff]
    %v1374 = vld [vmem:[#allocation4 + $0x368] sm:$0xff]
    %v1375 = vld [vmem:[#allocation4 + $0x370] sm:$0xff]
    %v1376 = vld [vmem:[#allocation4 + $0x378] sm:$0xff]
    %v1377 = vld [vmem:[#allocation4 + $0x380] sm:$0xff]
    %v1378 = vld [vmem:[#allocation4 + $0x388] sm:$0xff]
    %v1379 = vld [vmem:[#allocation4 + $0x390] sm:$0xff]
    %v1380 = vld [vmem:[#allocation4 + $0x398] sm:$0xff]
    %v1381 = vld [vmem:[#allocation4 + $0x3a0] sm:$0xff]
    %v1382 = vld [vmem:[#allocation4 + $0x3a8] sm:$0xff]
    %v1383 = vld [vmem:[#allocation4 + $0x3b0] sm:$0xff]
    %v1384 = vld [vmem:[#allocation4 + $0x3b8] sm:$0xff]
    %v1385 = vld [vmem:[#allocation4 + $0x3c0] sm:$0xff]
    %v1386 = vld [vmem:[#allocation4 + $0x3c8] sm:$0xff]
    %v1387 = vld [vmem:[#allocation4 + $0x3d0] sm:$0xff]
    %v1388 = vld [vmem:[#allocation4 + $0x3d8] sm:$0xff]
    %v1389 = vld [vmem:[#allocation4 + $0x3e0] sm:$0xff]
    %v1390 = vld [vmem:[#allocation4 + $0x3e8] sm:$0xff]
    %v1391 = vld [vmem:[#allocation4 + $0x3f0] sm:$0xff]
    %v1392 = vld [vmem:[#allocation4 + $0x3f8] sm:$0xff]
    %v1393 = vld [vmem:[#allocation4 + $0x400] sm:$0xff]
    %v1394 = vld [vmem:[#allocation4 + $0x408] sm:$0xff]
    %v1395 = vld [vmem:[#allocation4 + $0x410] sm:$0xff]
    %v1396 = vld [vmem:[#allocation4 + $0x418] sm:$0xff]
    %v1397 = vld [vmem:[#allocation4 + $0x420] sm:$0xff]
    %v1398 = vld [vmem:[#allocation4 + $0x428] sm:$0xff]
    %v1399 = vld [vmem:[#allocation4 + $0x430] sm:$0xff]
    %v1400 = vld [vmem:[#allocation4 + $0x438] sm:$0xff]
    %v1401 = vld [vmem:[#allocation4 + $0x440] sm:$0xff]
    %v1402 = vld [vmem:[#allocation4 + $0x448] sm:$0xff]
    %v1403 = vld [vmem:[#allocation4 + $0x450] sm:$0xff]
    %v1404 = vld [vmem:[#allocation4 + $0x458] sm:$0xff]
    %v1405 = vld [vmem:[#allocation4 + $0x460] sm:$0xff]
    %v1406 = vld [vmem:[#allocation4 + $0x468] sm:$0xff]
    %v1407 = vld [vmem:[#allocation4 + $0x470] sm:$0xff]
    %v1408 = vld [vmem:[#allocation4 + $0x478] sm:$0xff]
    %v1409 = vld [vmem:[#allocation4 + $0x480] sm:$0xff]
    %v1410 = vld [vmem:[#allocation4 + $0x488] sm:$0xff]
    %v1411 = vld [vmem:[#allocation4 + $0x490] sm:$0xff]
    %v1412 = vld [vmem:[#allocation4 + $0x498] sm:$0xff]
    %v1413 = vld [vmem:[#allocation4 + $0x4a0] sm:$0xff]
    %v1414 = vld [vmem:[#allocation4 + $0x4a8] sm:$0xff]
    %v1415 = vld [vmem:[#allocation4 + $0x4b0] sm:$0xff]
    %v1416 = vld [vmem:[#allocation4 + $0x4b8] sm:$0xff]
    %v1417 = vld [vmem:[#allocation4 + $0x4c0] sm:$0xff]
    %v1418 = vld [vmem:[#allocation4 + $0x4c8] sm:$0xff]
    %v1419 = vld [vmem:[#allocation4 + $0x4d0] sm:$0xff]
    %v1420 = vld [vmem:[#allocation4 + $0x4d8] sm:$0xff]
    %v1421 = vld [vmem:[#allocation4 + $0x4e0] sm:$0xff]
    %v1422 = vld [vmem:[#allocation4 + $0x4e8] sm:$0xff]
    %v1423 = vld [vmem:[#allocation4 + $0x4f0] sm:$0xff]
    %v1424 = vld [vmem:[#allocation4 + $0x4f8] sm:$0xff]
    %v1425 = vld [vmem:[#allocation4 + $0x500] sm:$0xff]
    %v1426 = vld [vmem:[#allocation4 + $0x508] sm:$0xff]
    %v1427 = vld [vmem:[#allocation4 + $0x510] sm:$0xff]
    %v1428 = vld [vmem:[#allocation4 + $0x518] sm:$0xff]
    %v1429 = vld [vmem:[#allocation4 + $0x520] sm:$0xff]
    %v1430 = vld [vmem:[#allocation4 + $0x528] sm:$0xff]
    %v1431 = vld [vmem:[#allocation4 + $0x530] sm:$0xff]
    %v1432 = vld [vmem:[#allocation4 + $0x538] sm:$0xff]
    %v1433 = vld [vmem:[#allocation4 + $0x540] sm:$0xff]
    %v1434 = vld [vmem:[#allocation4 + $0x548] sm:$0xff]
    %v1435 = vld [vmem:[#allocation4 + $0x550] sm:$0xff]
    %v1436 = vld [vmem:[#allocation4 + $0x558] sm:$0xff]
    %v1437 = vld [vmem:[#allocation4 + $0x560] sm:$0xff]
    %v1438 = vld [vmem:[#allocation4 + $0x568] sm:$0xff]
    %v1439 = vld [vmem:[#allocation4 + $0x570] sm:$0xff]
    %v1440 = vld [vmem:[#allocation4 + $0x578] sm:$0xff]
    %v1441 = vld [vmem:[#allocation4 + $0x580] sm:$0xff]
    %v1442 = vld [vmem:[#allocation4 + $0x588] sm:$0xff]
    %v1443 = vld [vmem:[#allocation4 + $0x590] sm:$0xff]
    %v1444 = vld [vmem:[#allocation4 + $0x598] sm:$0xff]
    %v1445 = vld [vmem:[#allocation4 + $0x5a0] sm:$0xff]
    %v1446 = vld [vmem:[#allocation4 + $0x5a8] sm:$0xff]
    %v1447 = vld [vmem:[#allocation4 + $0x5b0] sm:$0xff]
    %v1448 = vld [vmem:[#allocation4 + $0x5b8] sm:$0xff]
    %v1449 = vld [vmem:[#allocation4 + $0x5c0] sm:$0xff]
    %v1450 = vld [vmem:[#allocation4 + $0x5c8] sm:$0xff]
    %v1451 = vld [vmem:[#allocation4 + $0x5d0] sm:$0xff]
    %v1452 = vld [vmem:[#allocation4 + $0x5d8] sm:$0xff]
    %v1453 = vld [vmem:[#allocation4 + $0x5e0] sm:$0xff]
    %v1454 = vld [vmem:[#allocation4 + $0x5e8] sm:$0xff]
    %v1455 = vld [vmem:[#allocation4 + $0x5f0] sm:$0xff]
    %v1456 = vld [vmem:[#allocation4 + $0x5f8] sm:$0xff]
    %v1457 = vld [vmem:[#allocation4 + $0x600] sm:$0xff]
    %v1458 = vld [vmem:[#allocation4 + $0x608] sm:$0xff]
    %v1459 = vld [vmem:[#allocation4 + $0x610] sm:$0xff]
    %v1460 = vld [vmem:[#allocation4 + $0x618] sm:$0xff]
    %v1461 = vld [vmem:[#allocation4 + $0x620] sm:$0xff]
    %v1462 = vld [vmem:[#allocation4 + $0x628] sm:$0xff]
    %v1463 = vld [vmem:[#allocation4 + $0x630] sm:$0xff]
    %v1464 = vld [vmem:[#allocation4 + $0x638] sm:$0xff]
    %v1465 = vld [vmem:[#allocation4 + $0x640] sm:$0xff]
    %v1466 = vld [vmem:[#allocation4 + $0x648] sm:$0xff]
    %v1467 = vld [vmem:[#allocation4 + $0x650] sm:$0xff]
    %v1468 = vld [vmem:[#allocation4 + $0x658] sm:$0xff]
    %v1469 = vld [vmem:[#allocation4 + $0x660] sm:$0xff]
    %v1470 = vld [vmem:[#allocation4 + $0x668] sm:$0xff]
    %v1471 = vld [vmem:[#allocation4 + $0x670] sm:$0xff]
    %v1472 = vld [vmem:[#allocation4 + $0x678] sm:$0xff]
    %v1473 = vld [vmem:[#allocation4 + $0x680] sm:$0xff]
    %v1474 = vld [vmem:[#allocation4 + $0x688] sm:$0xff]
    %v1475 = vld [vmem:[#allocation4 + $0x690] sm:$0xff]
    %v1476 = vld [vmem:[#allocation4 + $0x698] sm:$0xff]
    %v1477 = vld [vmem:[#allocation4 + $0x6a0] sm:$0xff]
    %v1478 = vld [vmem:[#allocation4 + $0x6a8] sm:$0xff]
    %v1479 = vld [vmem:[#allocation4 + $0x6b0] sm:$0xff]
    %v1480 = vld [vmem:[#allocation4 + $0x6b8] sm:$0xff]
    %v1481 = vld [vmem:[#allocation4 + $0x6c0] sm:$0xff]
    %v1482 = vld [vmem:[#allocation4 + $0x6c8] sm:$0xff]
    %v1483 = vld [vmem:[#allocation4 + $0x6d0] sm:$0xff]
    %v1484 = vld [vmem:[#allocation4 + $0x6d8] sm:$0xff]
    %v1485 = vld [vmem:[#allocation4 + $0x6e0] sm:$0xff]
    %v1486 = vld [vmem:[#allocation4 + $0x6e8] sm:$0xff]
    %v1487 = vld [vmem:[#allocation4 + $0x6f0] sm:$0xff]
    %v1488 = vld [vmem:[#allocation4 + $0x6f8] sm:$0xff]
    %v1489 = vld [vmem:[#allocation4 + $0x700] sm:$0xff]
    %v1490 = vld [vmem:[#allocation4 + $0x708] sm:$0xff]
    %v1491 = vld [vmem:[#allocation4 + $0x710] sm:$0xff]
    %v1492 = vld [vmem:[#allocation4 + $0x718] sm:$0xff]
    %v1493 = vld [vmem:[#allocation4 + $0x720] sm:$0xff]
    %v1494 = vld [vmem:[#allocation4 + $0x728] sm:$0xff]
    %v1495 = vld [vmem:[#allocation4 + $0x730] sm:$0xff]
    %v1496 = vld [vmem:[#allocation4 + $0x738] sm:$0xff]
    %v1497 = vld [vmem:[#allocation4 + $0x740] sm:$0xff]
    %v1498 = vld [vmem:[#allocation4 + $0x748] sm:$0xff]
    %v1499 = vld [vmem:[#allocation4 + $0x750] sm:$0xff]
    %v1500 = vld [vmem:[#allocation4 + $0x758] sm:$0xff]
    %v1501 = vld [vmem:[#allocation4 + $0x760] sm:$0xff]
    %v1502 = vld [vmem:[#allocation4 + $0x768] sm:$0xff]
    %v1503 = vld [vmem:[#allocation4 + $0x770] sm:$0xff]
    %v1504 = vld [vmem:[#allocation4 + $0x778] sm:$0xff]
    %v1505 = vld [vmem:[#allocation4 + $0x780] sm:$0xff]
    %v1506 = vld [vmem:[#allocation4 + $0x788] sm:$0xff]
    %v1507 = vld [vmem:[#allocation4 + $0x790] sm:$0xff]
    %v1508 = vld [vmem:[#allocation4 + $0x798] sm:$0xff]
    %v1509 = vld [vmem:[#allocation4 + $0x7a0] sm:$0xff]
    %v1510 = vld [vmem:[#allocation4 + $0x7a8] sm:$0xff]
    %v1511 = vld [vmem:[#allocation4 + $0x7b0] sm:$0xff]
    %v1512 = vld [vmem:[#allocation4 + $0x7b8] sm:$0xff]
    %v1513 = vld [vmem:[#allocation4 + $0x7c0] sm:$0xff]
    %v1514 = vld [vmem:[#allocation4 + $0x7c8] sm:$0xff]
    %v1515 = vld [vmem:[#allocation4 + $0x7d0] sm:$0xff]
    %v1516 = vld [vmem:[#allocation4 + $0x7d8] sm:$0xff]
    %v1517 = vld [vmem:[#allocation4 + $0x7e0] sm:$0xff]
    %v1518 = vld [vmem:[#allocation4 + $0x7e8] sm:$0xff]
    %v1519 = vld [vmem:[#allocation4 + $0x7f0] sm:$0xff]
    %v1520 = vld [vmem:[#allocation4 + $0x7f8] sm:$0xff]
    %1521 = vmatprep.subr.mxu0 %v1266
    %1522 = vmatpush1.msra.mxu0 %v1265
    %1523 = vmatprep.subr.mxu0 %v1268
    %1524 = vmatpush1.msra.mxu0 %v1267
    %1525 = vmatprep.subr.mxu0 %v1270
    %1526 = vmatpush1.msra.mxu0 %v1269
    %1527 = vmatprep.subr.mxu0 %v1272
    %1528 = vmatpush1.msra.mxu0 %v1271
    %1529 = vmatprep.subr.mxu0 %v1274
    %1530 = vmatpush1.msra.mxu0 %v1273
    %1531 = vmatprep.subr.mxu0 %v1276
    %1532 = vmatpush1.msra.mxu0 %v1275
    %1533 = vmatprep.subr.mxu0 %v1278
    %1534 = vmatpush1.msra.mxu0 %v1277
    %1535 = vmatprep.subr.mxu0 %v1280
    %1536 = vmatpush1.msra.mxu0 %v1279
    %1537 = vmatprep.subr.mxu0 %v1282
    %1538 = vmatpush1.msra.mxu0 %v1281
    %1539 = vmatprep.subr.mxu0 %v1284
    %1540 = vmatpush1.msra.mxu0 %v1283
    %1541 = vmatprep.subr.mxu0 %v1286
    %1542 = vmatpush1.msra.mxu0 %v1285
    %1543 = vmatprep.subr.mxu0 %v1288
    %1544 = vmatpush1.msra.mxu0 %v1287
    %1545 = vmatprep.subr.mxu0 %v1290
    %1546 = vmatpush1.msra.mxu0 %v1289
    %1547 = vmatprep.subr.mxu0 %v1292
    %1548 = vmatpush1.msra.mxu0 %v1291
    %1549 = vmatprep.subr.mxu0 %v1294
    %1550 = vmatpush1.msra.mxu0 %v1293
    %1551 = vmatprep.subr.mxu0 %v1296
    %1552 = vmatpush1.msra.mxu0 %v1295
    %1553 = vmatprep.subr.mxu0 %v1298
    %1554 = vmatpush1.msra.mxu0 %v1297
    %1555 = vmatprep.subr.mxu0 %v1300
    %1556 = vmatpush1.msra.mxu0 %v1299
    %1557 = vmatprep.subr.mxu0 %v1302
    %1558 = vmatpush1.msra.mxu0 %v1301
    %1559 = vmatprep.subr.mxu0 %v1304
    %1560 = vmatpush1.msra.mxu0 %v1303
    %1561 = vmatprep.subr.mxu0 %v1306
    %1562 = vmatpush1.msra.mxu0 %v1305
    %1563 = vmatprep.subr.mxu0 %v1308
    %1564 = vmatpush1.msra.mxu0 %v1307
    %1565 = vmatprep.subr.mxu0 %v1310
    %1566 = vmatpush1.msra.mxu0 %v1309
    %1567 = vmatprep.subr.mxu0 %v1312
    %1568 = vmatpush1.msra.mxu0 %v1311
    %1569 = vmatprep.subr.mxu0 %v1314
    %1570 = vmatpush1.msra.mxu0 %v1313
    %1571 = vmatprep.subr.mxu0 %v1316
    %1572 = vmatpush1.msra.mxu0 %v1315
    %1573 = vmatprep.subr.mxu0 %v1318
    %1574 = vmatpush1.msra.mxu0 %v1317
    %1575 = vmatprep.subr.mxu0 %v1320
    %1576 = vmatpush1.msra.mxu0 %v1319
    %1577 = vmatprep.subr.mxu0 %v1322
    %1578 = vmatpush1.msra.mxu0 %v1321
    %1579 = vmatprep.subr.mxu0 %v1324
    %1580 = vmatpush1.msra.mxu0 %v1323
    %1581 = vmatprep.subr.mxu0 %v1326
    %1582 = vmatpush1.msra.mxu0 %v1325
    %1583 = vmatprep.subr.mxu0 %v1328
    %1584 = vmatpush1.msra.mxu0 %v1327
    %1585 = vmatprep.mubr.f32.mxu0 %v1234
    %1586 = vmatmul.mubr.f32.gmra.mrb[0].mxu0 %v1233
    %v1587 = vpop.f32.mrb[0].mxu0
    %v1588 = vadd.f32 0.0, %v1587
    %v1589 = vpop.f32.mrb[0].mxu0
    %v1590 = vadd.f32 0.0, %v1589
    %1591 = vmatprep.mubr.f32.mxu0 %v1238
    %1592 = vmatmul.mubr.f32.gmra.mrb[0].mxu0 %v1237
    %v1593 = vpop.f32.mrb[0].mxu0
    %v1594 = vadd.f32 0.0, %v1593
    %v1595 = vpop.f32.mrb[0].mxu0
    %v1596 = vadd.f32 0.0, %v1595
    %1597 = vdwg.mxu0
    %1598 = vmatprep.subr.mxu0 %v1330
    %1599 = vmatpush1.msra.mxu0 %v1329
    %1600 = vmatprep.subr.mxu0 %v1332
    %1601 = vmatpush1.msra.mxu0 %v1331
    %1602 = vmatprep.subr.mxu0 %v1334
    %1603 = vmatpush1.msra.mxu0 %v1333
    %1604 = vmatprep.subr.mxu0 %v1336
    %1605 = vmatpush1.msra.mxu0 %v1335
    %1606 = vmatprep.subr.mxu0 %v1338
    %1607 = vmatpush1.msra.mxu0 %v1337
    %1608 = vmatprep.subr.mxu0 %v1340
    %1609 = vmatpush1.msra.mxu0 %v1339
    %1610 = vmatprep.subr.mxu0 %v1342
    %1611 = vmatpush1.msra.mxu0 %v1341
    %1612 = vmatprep.subr.mxu0 %v1344
    %1613 = vmatpush1.msra.mxu0 %v1343
    %1614 = vmatprep.subr.mxu0 %v1346
    %1615 = vmatpush1.msra.mxu0 %v1345
    %1616 = vmatprep.subr.mxu0 %v1348
    %1617 = vmatpush1.msra.mxu0 %v1347
    %1618 = vmatprep.subr.mxu0 %v1350
    %1619 = vmatpush1.msra.mxu0 %v1349
    %1620 = vmatprep.subr.mxu0 %v1352
    %1621 = vmatpush1.msra.mxu0 %v1351
    %1622 = vmatprep.subr.mxu0 %v1354
    %1623 = vmatpush1.msra.mxu0 %v1353
    %1624 = vmatprep.subr.mxu0 %v1356
    %1625 = vmatpush1.msra.mxu0 %v1355
    %1626 = vmatprep.subr.mxu0 %v1358
    %1627 = vmatpush1.msra.mxu0 %v1357
    %1628 = vmatprep.subr.mxu0 %v1360
    %1629 = vmatpush1.msra.mxu0 %v1359
    %1630 = vmatprep.subr.mxu0 %v1362
    %1631 = vmatpush1.msra.mxu0 %v1361
    %1632 = vmatprep.subr.mxu0 %v1364
    %1633 = vmatpush1.msra.mxu0 %v1363
    %1634 = vmatprep.subr.mxu0 %v1366
    %1635 = vmatpush1.msra.mxu0 %v1365
    %1636 = vmatprep.subr.mxu0 %v1368
    %1637 = vmatpush1.msra.mxu0 %v1367
    %1638 = vmatprep.subr.mxu0 %v1370
    %1639 = vmatpush1.msra.mxu0 %v1369
    %1640 = vmatprep.subr.mxu0 %v1372
    %1641 = vmatpush1.msra.mxu0 %v1371
    %1642 = vmatprep.subr.mxu0 %v1374
    %1643 = vmatpush1.msra.mxu0 %v1373
    %1644 = vmatprep.subr.mxu0 %v1376
    %1645 = vmatpush1.msra.mxu0 %v1375
    %1646 = vmatprep.subr.mxu0 %v1378
    %1647 = vmatpush1.msra.mxu0 %v1377
    %1648 = vmatprep.subr.mxu0 %v1380
    %1649 = vmatpush1.msra.mxu0 %v1379
    %1650 = vmatprep.subr.mxu0 %v1382
    %1651 = vmatpush1.msra.mxu0 %v1381
    %1652 = vmatprep.subr.mxu0 %v1384
    %1653 = vmatpush1.msra.mxu0 %v1383
    %1654 = vmatprep.subr.mxu0 %v1386
    %1655 = vmatpush1.msra.mxu0 %v1385
    %1656 = vmatprep.subr.mxu0 %v1388
    %1657 = vmatpush1.msra.mxu0 %v1387
    %1658 = vmatprep.subr.mxu0 %v1390
    %1659 = vmatpush1.msra.mxu0 %v1389
    %1660 = vmatprep.subr.mxu0 %v1392
    %1661 = vmatpush1.msra.mxu0 %v1391
    %1662 = vmatprep.mubr.f32.mxu0 %v1236
    %1663 = vmatmul.mubr.f32.gmra.mrb[0].mxu0 %v1235
    %v1664 = vpop.f32.mrb[0].mxu0
    %v1665 = vadd.f32 %v1588, %v1664
    %v1666 = vpop.f32.mrb[0].mxu0
    %v1667 = vadd.f32 %v1590, %v1666
    %1668 = vmatprep.mubr.f32.mxu0 %v1240
    %1669 = vmatmul.mubr.f32.gmra.mrb[0].mxu0 %v1239
    %v1670 = vpop.f32.mrb[0].mxu0
    %v1671 = vadd.f32 %v1594, %v1670
    %v1672 = vpop.f32.mrb[0].mxu0
    %v1673 = vadd.f32 %v1596, %v1672
    %1674 = vdwg.mxu0
    %1675 = vmatprep.subr.mxu0 %v1394
    %1676 = vmatpush1.msra.mxu0 %v1393
    %1677 = vmatprep.subr.mxu0 %v1396
    %1678 = vmatpush1.msra.mxu0 %v1395
    %1679 = vmatprep.subr.mxu0 %v1398
    %1680 = vmatpush1.msra.mxu0 %v1397
    %1681 = vmatprep.subr.mxu0 %v1400
    %1682 = vmatpush1.msra.mxu0 %v1399
    %1683 = vmatprep.subr.mxu0 %v1402
    %1684 = vmatpush1.msra.mxu0 %v1401
    %1685 = vmatprep.subr.mxu0 %v1404
    %1686 = vmatpush1.msra.mxu0 %v1403
    %1687 = vmatprep.subr.mxu0 %v1406
    %1688 = vmatpush1.msra.mxu0 %v1405
    %1689 = vmatprep.subr.mxu0 %v1408
    %1690 = vmatpush1.msra.mxu0 %v1407
    %1691 = vmatprep.subr.mxu0 %v1410
    %1692 = vmatpush1.msra.mxu0 %v1409
    %1693 = vmatprep.subr.mxu0 %v1412
    %1694 = vmatpush1.msra.mxu0 %v1411
    %1695 = vmatprep.subr.mxu0 %v1414
    %1696 = vmatpush1.msra.mxu0 %v1413
    %1697 = vmatprep.subr.mxu0 %v1416
    %1698 = vmatpush1.msra.mxu0 %v1415
    %1699 = vmatprep.subr.mxu0 %v1418
    %1700 = vmatpush1.msra.mxu0 %v1417
    %1701 = vmatprep.subr.mxu0 %v1420
    %1702 = vmatpush1.msra.mxu0 %v1419
    %1703 = vmatprep.subr.mxu0 %v1422
    %1704 = vmatpush1.msra.mxu0 %v1421
    %1705 = vmatprep.subr.mxu0 %v1424
    %1706 = vmatpush1.msra.mxu0 %v1423
    %1707 = vmatprep.subr.mxu0 %v1426
    %1708 = vmatpush1.msra.mxu0 %v1425
    %1709 = vmatprep.subr.mxu0 %v1428
    %1710 = vmatpush1.msra.mxu0 %v1427
    %1711 = vmatprep.subr.mxu0 %v1430
    %1712 = vmatpush1.msra.mxu0 %v1429
    %1713 = vmatprep.subr.mxu0 %v1432
    %1714 = vmatpush1.msra.mxu0 %v1431
    %1715 = vmatprep.subr.mxu0 %v1434
    %1716 = vmatpush1.msra.mxu0 %v1433
    %1717 = vmatprep.subr.mxu0 %v1436
    %1718 = vmatpush1.msra.mxu0 %v1435
    %1719 = vmatprep.subr.mxu0 %v1438
    %1720 = vmatpush1.msra.mxu0 %v1437
    %1721 = vmatprep.subr.mxu0 %v1440
    %1722 = vmatpush1.msra.mxu0 %v1439
    %1723 = vmatprep.subr.mxu0 %v1442
    %1724 = vmatpush1.msra.mxu0 %v1441
    %1725 = vmatprep.subr.mxu0 %v1444
    %1726 = vmatpush1.msra.mxu0 %v1443
    %1727 = vmatprep.subr.mxu0 %v1446
    %1728 = vmatpush1.msra.mxu0 %v1445
    %1729 = vmatprep.subr.mxu0 %v1448
    %1730 = vmatpush1.msra.mxu0 %v1447
    %1731 = vmatprep.subr.mxu0 %v1450
    %1732 = vmatpush1.msra.mxu0 %v1449
    %1733 = vmatprep.subr.mxu0 %v1452
    %1734 = vmatpush1.msra.mxu0 %v1451
    %1735 = vmatprep.subr.mxu0 %v1454
    %1736 = vmatpush1.msra.mxu0 %v1453
    %1737 = vmatprep.subr.mxu0 %v1456
    %1738 = vmatpush1.msra.mxu0 %v1455
    %1739 = vmatprep.mubr.f32.mxu0 %v1258
    %1740 = vmatmul.mubr.f32.gmra.mrb[0].mxu0 %v1257
    %v1741 = vpop.f32.mrb[0].mxu0
    %v1742 = vadd.f32 %v1665, %v1741
    %v1743 = vpop.f32.mrb[0].mxu0
    %v1744 = vadd.f32 %v1667, %v1743
    %1745 = vmatprep.mubr.f32.mxu0 %v1262
    %1746 = vmatmul.mubr.f32.gmra.mrb[0].mxu0 %v1261
    %v1747 = vpop.f32.mrb[0].mxu0
    %v1748 = vadd.f32 %v1671, %v1747
    %v1749 = vpop.f32.mrb[0].mxu0
    %v1750 = vadd.f32 %v1673, %v1749
    %1751 = vdwg.mxu0
    %1752 = vmatprep.subr.mxu0 %v1458
    %1753 = vmatpush1.msra.mxu0 %v1457
    %1754 = vmatprep.subr.mxu0 %v1460
    %1755 = vmatpush1.msra.mxu0 %v1459
    %1756 = vmatprep.subr.mxu0 %v1462
    %1757 = vmatpush1.msra.mxu0 %v1461
    %1758 = vmatprep.subr.mxu0 %v1464
    %1759 = vmatpush1.msra.mxu0 %v1463
    %1760 = vmatprep.subr.mxu0 %v1466
    %1761 = vmatpush1.msra.mxu0 %v1465
    %1762 = vmatprep.subr.mxu0 %v1468
    %1763 = vmatpush1.msra.mxu0 %v1467
    %1764 = vmatprep.subr.mxu0 %v1470
    %1765 = vmatpush1.msra.mxu0 %v1469
    %1766 = vmatprep.subr.mxu0 %v1472
    %1767 = vmatpush1.msra.mxu0 %v1471
    %1768 = vmatprep.subr.mxu0 %v1474
    %1769 = vmatpush1.msra.mxu0 %v1473
    %1770 = vmatprep.subr.mxu0 %v1476
    %1771 = vmatpush1.msra.mxu0 %v1475
    %1772 = vmatprep.subr.mxu0 %v1478
    %1773 = vmatpush1.msra.mxu0 %v1477
    %1774 = vmatprep.subr.mxu0 %v1480
    %1775 = vmatpush1.msra.mxu0 %v1479
    %1776 = vmatprep.subr.mxu0 %v1482
    %1777 = vmatpush1.msra.mxu0 %v1481
    %1778 = vmatprep.subr.mxu0 %v1484
    %1779 = vmatpush1.msra.mxu0 %v1483
    %1780 = vmatprep.subr.mxu0 %v1486
    %1781 = vmatpush1.msra.mxu0 %v1485
    %1782 = vmatprep.subr.mxu0 %v1488
    %1783 = vmatpush1.msra.mxu0 %v1487
    %1784 = vmatprep.subr.mxu0 %v1490
    %1785 = vmatpush1.msra.mxu0 %v1489
    %1786 = vmatprep.subr.mxu0 %v1492
    %1787 = vmatpush1.msra.mxu0 %v1491
    %1788 = vmatprep.subr.mxu0 %v1494
    %1789 = vmatpush1.msra.mxu0 %v1493
    %1790 = vmatprep.subr.mxu0 %v1496
    %1791 = vmatpush1.msra.mxu0 %v1495
    %1792 = vmatprep.subr.mxu0 %v1498
    %1793 = vmatpush1.msra.mxu0 %v1497
    %1794 = vmatprep.subr.mxu0 %v1500
    %1795 = vmatpush1.msra.mxu0 %v1499
    %1796 = vmatprep.subr.mxu0 %v1502
    %1797 = vmatpush1.msra.mxu0 %v1501
    %1798 = vmatprep.subr.mxu0 %v1504
    %1799 = vmatpush1.msra.mxu0 %v1503
    %1800 = vmatprep.subr.mxu0 %v1506
    %1801 = vmatpush1.msra.mxu0 %v1505
    %1802 = vmatprep.subr.mxu0 %v1508
    %1803 = vmatpush1.msra.mxu0 %v1507
    %1804 = vmatprep.subr.mxu0 %v1510
    %1805 = vmatpush1.msra.mxu0 %v1509
    %1806 = vmatprep.subr.mxu0 %v1512
    %1807 = vmatpush1.msra.mxu0 %v1511
    %1808 = vmatprep.subr.mxu0 %v1514
    %1809 = vmatpush1.msra.mxu0 %v1513
    %1810 = vmatprep.subr.mxu0 %v1516
    %1811 = vmatpush1.msra.mxu0 %v1515
    %1812 = vmatprep.subr.mxu0 %v1518
    %1813 = vmatpush1.msra.mxu0 %v1517
    %1814 = vmatprep.subr.mxu0 %v1520
    %1815 = vmatpush1.msra.mxu0 %v1519
    %1816 = vmatprep.mubr.f32.mxu0 %v1260
    %1817 = vmatmul.mubr.f32.gmra.mrb[0].mxu0 %v1259
    %v1818 = vpop.f32.mrb[0].mxu0
    %v1819 = vadd.f32 %v1742, %v1818
    %v1820 = vpop.f32.mrb[0].mxu0
    %v1821 = vadd.f32 %v1744, %v1820
    %1822 = vmatprep.mubr.f32.mxu0 %v1264
    %1823 = vmatmul.mubr.f32.gmra.mrb[0].mxu0 %v1263
    %v1824 = vpop.f32.mrb[0].mxu0
    %v1825 = vadd.f32 %v1748, %v1824
    %v1826 = vpop.f32.mrb[0].mxu0
    %v1827 = vadd.f32 %v1750, %v1826
    %1828 = vdwg.mxu0
    %v1829 = vld [vmem:[%s8] sm:$0xff]
    %v1830 = vld [vmem:[%s8 + $0x8] sm:$0xff]
    %v1832 = vsel %vm572, %v1829, 0
    %v1835 = vsel %vm572, %v1830, 0
    %1837 = vmatprep.subr.mxu0 0.0
    %1838 = vmatpush1.msra.mxu0 %v1819
    %1839 = vmatprep.subr.mxu0 0.0
    %1840 = vmatpush1.msra.mxu0 %v1825
    %1841 = vmatprep.subr.mxu0 0.0
    %1842 = vmatpush1.msra.mxu0 0.0
    %1843 = vmatprep.subr.mxu0 0.0
    %1844 = vmatpush1.msra.mxu0 0.0
    %1845 = vmatprep.subr.mxu0 0.0
    %1846 = vmatpush1.msra.mxu0 0.0
    %1847 = vmatprep.subr.mxu0 0.0
    %1848 = vmatpush1.msra.mxu0 0.0
    %1849 = vmatprep.subr.mxu0 0.0
    %1850 = vmatpush1.msra.mxu0 0.0
    %1851 = vmatprep.subr.mxu0 0.0
    %1852 = vmatpush1.msra.mxu0 0.0
    %1853 = vmatprep.subr.mxu0 0.0
    %1854 = vmatpush1.msra.mxu0 0.0
    %1855 = vmatprep.subr.mxu0 0.0
    %1856 = vmatpush1.msra.mxu0 0.0
    %1857 = vmatprep.subr.mxu0 0.0
    %1858 = vmatpush1.msra.mxu0 0.0
    %1859 = vmatprep.subr.mxu0 0.0
    %1860 = vmatpush1.msra.mxu0 0.0
    %1861 = vmatprep.subr.mxu0 0.0
    %1862 = vmatpush1.msra.mxu0 0.0
    %1863 = vmatprep.subr.mxu0 0.0
    %1864 = vmatpush1.msra.mxu0 0.0
    %1865 = vmatprep.subr.mxu0 0.0
    %1866 = vmatpush1.msra.mxu0 0.0
    %1867 = vmatprep.subr.mxu0 0.0
    %1868 = vmatpush1.msra.mxu0 0.0
    %1869 = vmatprep.subr.mxu0 0.0
    %1870 = vmatpush1.msra.mxu0 0.0
    %1871 = vmatprep.subr.mxu0 0.0
    %1872 = vmatpush1.msra.mxu0 0.0
    %1873 = vmatprep.subr.mxu0 0.0
    %1874 = vmatpush1.msra.mxu0 0.0
    %1875 = vmatprep.subr.mxu0 0.0
    %1876 = vmatpush1.msra.mxu0 0.0
    %1877 = vmatprep.subr.mxu0 0.0
    %1878 = vmatpush1.msra.mxu0 0.0
    %1879 = vmatprep.subr.mxu0 0.0
    %1880 = vmatpush1.msra.mxu0 0.0
    %1881 = vmatprep.subr.mxu0 0.0
    %1882 = vmatpush1.msra.mxu0 0.0
    %1883 = vmatprep.subr.mxu0 0.0
    %1884 = vmatpush1.msra.mxu0 0.0
    %1885 = vmatprep.subr.mxu0 0.0
    %1886 = vmatpush1.msra.mxu0 0.0
    %1887 = vmatprep.subr.mxu0 0.0
    %1888 = vmatpush1.msra.mxu0 0.0
    %1889 = vmatprep.subr.mxu0 0.0
    %1890 = vmatpush1.msra.mxu0 0.0
    %1891 = vmatprep.subr.mxu0 0.0
    %1892 = vmatpush1.msra.mxu0 0.0
    %1893 = vmatprep.subr.mxu0 0.0
    %1894 = vmatpush1.msra.mxu0 0.0
    %1895 = vmatprep.subr.mxu0 0.0
    %1896 = vmatpush1.msra.mxu0 0.0
    %1897 = vmatprep.subr.mxu0 0.0
    %1898 = vmatpush1.msra.mxu0 0.0
    %1899 = vmatprep.subr.mxu0 0.0
    %1900 = vmatpush1.msra.mxu0 0.0
    %1901 = vmatprep.mubr.f32.mxu0 0.0
    %1902 = vmatmul.mubr.f32.gmra.mrb[0].mxu0 %v1832
    %v1903 = vpop.f32.mrb[0].mxu0
    %v1904 = vadd.f32 0.0, %v1903
    %v1905 = vpop.f32.mrb[0].mxu0
    %1906 = vmatprep.mubr.f32.mxu0 0.0
    %1907 = vmatmul.mubr.f32.gmra.mrb[0].mxu0 %v1835
    %v1908 = vpop.f32.mrb[0].mxu0
    %v1909 = vadd.f32 0.0, %v1908
    %v1910 = vpop.f32.mrb[0].mxu0
    %1911 = vdwg.mxu0
    %v1912 = vld [vmem:[%s9] sm:$0xff]
    %v1913 = vld [vmem:[%s9 + $0x8] sm:$0xff]
    %v1915 = vsel %vm572, %v1912, 0
    %v1918 = vsel %vm572, %v1913, 0
    %1920 = vmatprep.subr.mxu0 0.0
    %1921 = vmatpush1.msra.mxu0 %v1821
    %1922 = vmatprep.subr.mxu0 0.0
    %1923 = vmatpush1.msra.mxu0 %v1827
    %1924 = vmatprep.subr.mxu0 0.0
    %1925 = vmatpush1.msra.mxu0 0.0
    %1926 = vmatprep.subr.mxu0 0.0
    %1927 = vmatpush1.msra.mxu0 0.0
    %1928 = vmatprep.subr.mxu0 0.0
    %1929 = vmatpush1.msra.mxu0 0.0
    %1930 = vmatprep.subr.mxu0 0.0
    %1931 = vmatpush1.msra.mxu0 0.0
    %1932 = vmatprep.subr.mxu0 0.0
    %1933 = vmatpush1.msra.mxu0 0.0
    %1934 = vmatprep.subr.mxu0 0.0
    %1935 = vmatpush1.msra.mxu0 0.0
    %1936 = vmatprep.subr.mxu0 0.0
    %1937 = vmatpush1.msra.mxu0 0.0
    %1938 = vmatprep.subr.mxu0 0.0
    %1939 = vmatpush1.msra.mxu0 0.0
    %1940 = vmatprep.subr.mxu0 0.0
    %1941 = vmatpush1.msra.mxu0 0.0
    %1942 = vmatprep.subr.mxu0 0.0
    %1943 = vmatpush1.msra.mxu0 0.0
    %1944 = vmatprep.subr.mxu0 0.0
    %1945 = vmatpush1.msra.mxu0 0.0
    %1946 = vmatprep.subr.mxu0 0.0
    %1947 = vmatpush1.msra.mxu0 0.0
    %1948 = vmatprep.subr.mxu0 0.0
    %1949 = vmatpush1.msra.mxu0 0.0
    %1950 = vmatprep.subr.mxu0 0.0
    %1951 = vmatpush1.msra.mxu0 0.0
    %1952 = vmatprep.subr.mxu0 0.0
    %1953 = vmatpush1.msra.mxu0 0.0
    %1954 = vmatprep.subr.mxu0 0.0
    %1955 = vmatpush1.msra.mxu0 0.0
    %1956 = vmatprep.subr.mxu0 0.0
    %1957 = vmatpush1.msra.mxu0 0.0
    %1958 = vmatprep.subr.mxu0 0.0
    %1959 = vmatpush1.msra.mxu0 0.0
    %1960 = vmatprep.subr.mxu0 0.0
    %1961 = vmatpush1.msra.mxu0 0.0
    %1962 = vmatprep.subr.mxu0 0.0
    %1963 = vmatpush1.msra.mxu0 0.0
    %1964 = vmatprep.subr.mxu0 0.0
    %1965 = vmatpush1.msra.mxu0 0.0
    %1966 = vmatprep.subr.mxu0 0.0
    %1967 = vmatpush1.msra.mxu0 0.0
    %1968 = vmatprep.subr.mxu0 0.0
    %1969 = vmatpush1.msra.mxu0 0.0
    %1970 = vmatprep.subr.mxu0 0.0
    %1971 = vmatpush1.msra.mxu0 0.0
    %1972 = vmatprep.subr.mxu0 0.0
    %1973 = vmatpush1.msra.mxu0 0.0
    %1974 = vmatprep.subr.mxu0 0.0
    %1975 = vmatpush1.msra.mxu0 0.0
    %1976 = vmatprep.subr.mxu0 0.0
    %1977 = vmatpush1.msra.mxu0 0.0
    %1978 = vmatprep.subr.mxu0 0.0
    %1979 = vmatpush1.msra.mxu0 0.0
    %1980 = vmatprep.subr.mxu0 0.0
    %1981 = vmatpush1.msra.mxu0 0.0
    %1982 = vmatprep.subr.mxu0 0.0
    %1983 = vmatpush1.msra.mxu0 0.0
    %1984 = vmatprep.mubr.f32.mxu0 0.0
    %1985 = vmatmul.mubr.f32.gmra.mrb[0].mxu0 %v1915
    %v1986 = vpop.f32.mrb[0].mxu0
    %v1987 = vadd.f32 0.0, %v1986
    %v1988 = vpop.f32.mrb[0].mxu0
    %1989 = vmatprep.mubr.f32.mxu0 0.0
    %1990 = vmatmul.mubr.f32.gmra.mrb[0].mxu0 %v1918
    %v1991 = vpop.f32.mrb[0].mxu0
    %v1992 = vadd.f32 0.0, %v1991
    %v1993 = vpop.f32.mrb[0].mxu0
    %1994 = vdwg.mxu0
    %v1995 = vsub.f32 %v1904, %v1987
    %v1996 = vsub.f32 %v1909, %v1992
    %v1997 = vld [vmem:[%s10] sm:$0xff]
    %v1998 = vld [vmem:[%s10 + $0x8] sm:$0xff]
    %v1999 = vld [vmem:[%s10 + $0x10] sm:$0xff]
    %v2000 = vld [vmem:[%s10 + $0x18] sm:$0xff]
    %v2001 = vld [vmem:[%s10 + $0x20] sm:$0xff]
    %v2002 = vld [vmem:[%s10 + $0x28] sm:$0xff]
    %v2003 = vld [vmem:[%s10 + $0x30] sm:$0xff]
    %v2004 = vld [vmem:[%s10 + $0x38] sm:$0xff]
    %v2005 = vld [vmem:[%s10 + $0x40] sm:$0xff]
    %v2006 = vld [vmem:[%s10 + $0x48] sm:$0xff]
    %v2007 = vld [vmem:[%s10 + $0x50] sm:$0xff]
    %v2008 = vld [vmem:[%s10 + $0x58] sm:$0xff]
    %v2009 = vld [vmem:[%s10 + $0x60] sm:$0xff]
    %v2010 = vld [vmem:[%s10 + $0x68] sm:$0xff]
    %v2011 = vld [vmem:[%s10 + $0x70] sm:$0xff]
    %v2012 = vld [vmem:[%s10 + $0x78] sm:$0xff]
    %2013 = vmatprep.subr.mxu0 0.0
    %2014 = vmatpush1.msra.mxu0 %v1997
    %2015 = vmatprep.subr.mxu0 0.0
    %2016 = vmatpush1.msra.mxu0 %v1998
    %2017 = vmatprep.subr.mxu0 0.0
    %2018 = vmatpush1.msra.mxu0 %v1999
    %2019 = vmatprep.subr.mxu0 0.0
    %2020 = vmatpush1.msra.mxu0 %v2000
    %2021 = vmatprep.subr.mxu0 0.0
    %2022 = vmatpush1.msra.mxu0 %v2001
    %2023 = vmatprep.subr.mxu0 0.0
    %2024 = vmatpush1.msra.mxu0 %v2002
    %2025 = vmatprep.subr.mxu0 0.0
    %2026 = vmatpush1.msra.mxu0 %v2003
    %2027 = vmatprep.subr.mxu0 0.0
    %2028 = vmatpush1.msra.mxu0 %v2004
    %2029 = vmatprep.subr.mxu0 0.0
    %2030 = vmatpush1.msra.mxu0 %v2005
    %2031 = vmatprep.subr.mxu0 0.0
    %2032 = vmatpush1.msra.mxu0 %v2006
    %2033 = vmatprep.subr.mxu0 0.0
    %2034 = vmatpush1.msra.mxu0 %v2007
    %2035 = vmatprep.subr.mxu0 0.0
    %2036 = vmatpush1.msra.mxu0 %v2008
    %2037 = vmatprep.subr.mxu0 0.0
    %2038 = vmatpush1.msra.mxu0 %v2009
    %2039 = vmatprep.subr.mxu0 0.0
    %2040 = vmatpush1.msra.mxu0 %v2010
    %2041 = vmatprep.subr.mxu0 0.0
    %2042 = vmatpush1.msra.mxu0 %v2011
    %2043 = vmatprep.subr.mxu0 0.0
    %2044 = vmatpush1.msra.mxu0 %v2012
    %2045 = vmatprep.subr.mxu0 0.0
    %2046 = vmatpush1.msra.mxu0 0.0
    %2047 = vmatprep.subr.mxu0 0.0
    %2048 = vmatpush1.msra.mxu0 0.0
    %2049 = vmatprep.subr.mxu0 0.0
    %2050 = vmatpush1.msra.mxu0 0.0
    %2051 = vmatprep.subr.mxu0 0.0
    %2052 = vmatpush1.msra.mxu0 0.0
    %2053 = vmatprep.subr.mxu0 0.0
    %2054 = vmatpush1.msra.mxu0 0.0
    %2055 = vmatprep.subr.mxu0 0.0
    %2056 = vmatpush1.msra.mxu0 0.0
    %2057 = vmatprep.subr.mxu0 0.0
    %2058 = vmatpush1.msra.mxu0 0.0
    %2059 = vmatprep.subr.mxu0 0.0
    %2060 = vmatpush1.msra.mxu0 0.0
    %2061 = vmatprep.subr.mxu0 0.0
    %2062 = vmatpush1.msra.mxu0 0.0
    %2063 = vmatprep.subr.mxu0 0.0
    %2064 = vmatpush1.msra.mxu0 0.0
    %2065 = vmatprep.subr.mxu0 0.0
    %2066 = vmatpush1.msra.mxu0 0.0
    %2067 = vmatprep.subr.mxu0 0.0
    %2068 = vmatpush1.msra.mxu0 0.0
    %2069 = vmatprep.subr.mxu0 0.0
    %2070 = vmatpush1.msra.mxu0 0.0
    %2071 = vmatprep.subr.mxu0 0.0
    %2072 = vmatpush1.msra.mxu0 0.0
    %2073 = vmatprep.subr.mxu0 0.0
    %2074 = vmatpush1.msra.mxu0 0.0
    %2075 = vmatprep.subr.mxu0 0.0
    %2076 = vmatpush1.msra.mxu0 0.0
    %2077 = vmatprep.mubr.f32.mxu0 0.0
    %2078 = vmatmul.mubr.f32.gmra.mrb[0].mxu0 %v72
    %v2079 = vpop.f32.mrb[0].mxu0
    %v2080 = vadd.f32 %v1995, %v2079
    %v2081 = vpop.f32.mrb[0].mxu0
    %2082 = vmatprep.mubr.f32.mxu0 0.0
    %2083 = vmatmul.mubr.f32.gmra.mrb[0].mxu0 %v73
    %v2084 = vpop.f32.mrb[0].mxu0
    %v2085 = vadd.f32 %v1996, %v2084
    %v2086 = vpop.f32.mrb[0].mxu0
    %2087 = vdwg.mxu0
    %v2088 = vld [vmem:[%s11] sm:$0x1]
    %v2090 = vlaneseq
    %v2091 = vshrl.u32 %v2090, 7
    %v2092 = vsub.s32 0, %v2091
    %v2093 = vrot.slane %v2088, %v2092
    %v2095 = vadd.f32 %v2080, %v2093
    %v2096 = vadd.f32 %v2085, %v2093
    %vm2097 = vcmp.ge.f32.partialorder %v2095, 0.0
    %vm2098 = vcmp.ge.f32.partialorder %v2096, 0.0
    %v2099 = vld [vmem:[%s12] sm:$0x1]
    %v2101 = vlaneseq
    %v2102 = vshrl.u32 %v2101, 7
    %v2103 = vsub.s32 0, %v2102
    %v2104 = vrot.slane %v2099, %v2103
    %v2106 = vmul.f32 %v2104, %v2095
    %v2107 = vmul.f32 %v2104, %v2096
    %v2108 = vsel %vm2097, %v2095, %v2106
    %v2109 = vsel %vm2098, %v2096, %v2107
    %2110 = vst [vmem:[%s13] sm:$0xff] %v2108
    %2111 = vst [vmem:[%s13 + $0x8] sm:$0xff] %v2109
    // Predicated region
    $region62: #{forward.1} parent=1 // pred_check
      _
    $region63: #{forward.1} parent=1 // pred_check_branch
      %2113 = sbr.rel (0) target = $region65
    $region64: #{forward.1} parent=1 // pred_region
      _
    $region65: #{forward.1} parent=1 // pred_fallthru
      _
    // Predicated region
    $region66: #{forward.1} parent=1 // pred_check
      _
    $region67: #{forward.1} parent=1 // pred_check_branch
      %2115 = sbr.rel (0) target = $region69
    $region68: #{forward.1} parent=1 // pred_region
      _
    $region69: #{forward.1} parent=1 // pred_fallthru
      _
    %2116 = vsyncpa [#allocation3], 1
    %2117 = vsyncpa [#allocation5], 1

</llo_original>
